<compile_context>
chip_gen: v7x
topology: tpu7x:2x2x1
jax: 0.10.0
libtpu: 0.0.40
codegen_flags: <defaults>
</compile_context>

<pallas_src>
import functools

import jax
import jax.numpy as jnp
from jax.experimental import pallas as pl
from jax.experimental.pallas import tpu as pltpu


def _round_up(x, m):
    return (x + m - 1) // m * m


# ----------------------------------------------------------------------------
# Pallas kernels
# ----------------------------------------------------------------------------

def _sepconv_pool_kernel(ph_ref, wdw1_ref, wpw1_ref, s1_ref, b1_ref,
                         wdw2_ref, wpw2_ref, s2_ref, b2_ref,
                         feat_ref, dw2d_ref, midp_ref):
    """Fused SepConv + global avg pool for ONE batch element (grid over N).

    ph_ref   : (4, Hph, Wph, Cin)  2x2 phase split of the zero-padded input
                                   (phase p = 2*(row%2) + (col%2)) so every
                                   stride-2 tap is a unit-stride static slice.
    wdw*_ref : (9, 1, C)           depthwise 3x3 weights, tap-major, lane-dense.
    wpw*_ref : (Cin, Cmid) / (Cmid, Cout)  1x1-conv weights (bf16, MXU).
    s*_ref, b*_ref : (1, C)        folded inference-BatchNorm scale / shift.
    feat_ref : (1, Cout)           spatially averaged output features.
    dw2d_ref : VMEM (Ho*Wo, Cmid)  depthwise result as lane-dense matmul LHS.
    midp_ref : VMEM (Ho+2, Wo+2, Cmid)  zero-padded mid activation.
    """
    Hp2, Wp2, _ = midp_ref.shape
    Ho, Wo = Hp2 - 2, Wp2 - 2

    # ---- depthwise 3x3, stride 2 (taps from the 2x2 phase decomposition) ----
    wdw1 = wdw1_ref[...]                                   # (9, 1, Cin) f32
    acc = None
    for ky in range(3):
        for kx in range(3):
            p = (ky % 2) * 2 + (kx % 2)
            oy, ox = ky // 2, kx // 2
            tap = ph_ref[p, oy:oy + Ho, ox:ox + Wo, :]     # (Ho, Wo, Cin) f32
            t = tap * wdw1[3 * ky + kx]                    # f32 accumulation
            acc = t if acc is None else acc + t
    # (Ho, Wo, C) -> lane-dense (Ho*Wo, C) through VMEM (avoids in-kernel
    # reshape across the sublane tiling).
    for i in range(Ho):
        dw2d_ref[i * Wo:(i + 1) * Wo, :] = acc[i]

    # ---- 1x1 conv + BN + ReLU  (MXU: bf16 operands, f32 accumulate) ----
    y1 = jnp.dot(dw2d_ref[...].astype(jnp.bfloat16), wpw1_ref[...],
                 preferred_element_type=jnp.float32)
    y1 = jnp.maximum(y1 * s1_ref[...] + b1_ref[...], 0.0)  # (Ho*Wo, Cmid)

    # ---- scatter into zero-padded mid scratch for the stride-1 depthwise ----
    midp_ref[...] = jnp.zeros_like(midp_ref)
    for i in range(Ho):
        midp_ref[1 + i:2 + i, 1:1 + Wo, :] = y1[i * Wo:(i + 1) * Wo, :][None]

    # ---- depthwise 3x3, stride 1 ----
    wdw2 = wdw2_ref[...]                                   # (9, 1, Cmid) f32
    acc2 = None
    for ky in range(3):
        for kx in range(3):
            tap = midp_ref[ky:ky + Ho, kx:kx + Wo, :]      # (Ho, Wo, Cmid)
            t = tap * wdw2[3 * ky + kx]
            acc2 = t if acc2 is None else acc2 + t
    for i in range(Ho):
        dw2d_ref[i * Wo:(i + 1) * Wo, :] = acc2[i]

    # ---- 1x1 conv + BN + ReLU + avgpool3 epilogue ----
    y2 = jnp.dot(dw2d_ref[...].astype(jnp.bfloat16), wpw2_ref[...],
                 preferred_element_type=jnp.float32)
    y2 = jnp.maximum(y2 * s2_ref[...] + b2_ref[...], 0.0)  # (Ho*Wo, Cout)
    feat_ref[...] = jnp.mean(y2, axis=0, keepdims=True).astype(feat_ref.dtype)


def _fc_consensus_kernel(x_ref, w_ref, b_ref, o_ref):
    """middle_fc3 + avg segment consensus for ONE video (grid over batch).

    x_ref: (S, Cout) f32, w_ref: (Cout, NCp) bf16, b_ref/o_ref: (1, NCp) f32.
    """
    logits = jnp.dot(x_ref[...].astype(jnp.bfloat16), w_ref[...],
                     preferred_element_type=jnp.float32) + b_ref[...]
    o_ref[...] = jnp.mean(logits, axis=0, keepdims=True).astype(o_ref.dtype)


# ----------------------------------------------------------------------------
# Wrappers
# ----------------------------------------------------------------------------

def _fold_bn(gamma, beta, mean, var, eps=1e-5):
    inv = gamma.astype(jnp.float32) / jnp.sqrt(var.astype(jnp.float32) + eps)
    scale = inv
    shift = beta.astype(jnp.float32) - mean.astype(jnp.float32) * inv
    return scale.reshape(1, -1), shift.reshape(1, -1)


def tsn_middle3_forward(x_nchw, params, num_segments):
    """x_nchw: (B*num_segments, C_in, H, W) layer3 feature maps (NCHW)."""
    x = jnp.transpose(x_nchw, (0, 2, 3, 1)).astype(jnp.float32)   # NCHW -> NHWC
    N, H, W, Cin = x.shape
    assert H % 2 == 0 and W % 2 == 0, "stride-2 phase split needs even H, W"

    # zero-pad (padding=1) and split into the 4 stride-2 phases in the wrapper
    # (~1x input traffic, vs the old 9x tap stack); all per-tap slicing then
    # happens in VMEM inside the fused kernel.
    xp = jnp.pad(x, ((0, 0), (1, 1), (1, 1), (0, 0)))
    phases = jnp.stack([xp[:, a::2, b::2, :] for a in (0, 1) for b in (0, 1)],
                       axis=1)                                    # (N,4,Hph,Wph,Cin)
    Hph, Wph = phases.shape[2], phases.shape[3]
    Ho = (H + 2 - 3) // 2 + 1
    Wo = (W + 2 - 3) // 2 + 1

    p3 = params["scala3"]
    Cmid = p3["pw1"].shape[1]
    Cout = p3["pw2"].shape[1]
    s1, b1 = _fold_bn(*p3["bn1"])
    s2, b2 = _fold_bn(*p3["bn2"])
    wdw1 = p3["dw1"].reshape(9, 1, Cin).astype(jnp.float32)
    wdw2 = p3["dw2"].reshape(9, 1, Cmid).astype(jnp.float32)
    wpw1 = p3["pw1"].astype(jnp.bfloat16)                 # MXU operands in bf16
    wpw2 = p3["pw2"].astype(jnp.bfloat16)

    feat = pl.pallas_call(
        _sepconv_pool_kernel,
        out_shape=jax.ShapeDtypeStruct((N, 1, Cout), jnp.float32),
        grid=(N,),
        in_specs=[
            pl.BlockSpec((None, 4, Hph, Wph, Cin), lambda n: (n, 0, 0, 0, 0)),
            pl.BlockSpec((9, 1, Cin), lambda n: (0, 0, 0)),
            pl.BlockSpec((Cin, Cmid), lambda n: (0, 0)),
            pl.BlockSpec((1, Cmid), lambda n: (0, 0)),
            pl.BlockSpec((1, Cmid), lambda n: (0, 0)),
            pl.BlockSpec((9, 1, Cmid), lambda n: (0, 0, 0)),
            pl.BlockSpec((Cmid, Cout), lambda n: (0, 0)),
            pl.BlockSpec((1, Cout), lambda n: (0, 0)),
            pl.BlockSpec((1, Cout), lambda n: (0, 0)),
        ],
        out_specs=pl.BlockSpec((None, 1, Cout), lambda n: (n, 0, 0)),
        scratch_shapes=[
            pltpu.VMEM((Ho * Wo, Cmid), jnp.float32),     # dw result (matmul LHS)
            pltpu.VMEM((Ho + 2, Wo + 2, Cmid), jnp.float32),  # padded mid act
        ],
        compiler_params=pltpu.CompilerParams(
            dimension_semantics=("parallel",)),
    )(phases, wdw1, wpw1, s1, b1, wdw2, wpw2, s2, b2)     # -> (N, 1, Cout)

    feat = feat.reshape(-1, num_segments, Cout)           # (B, S, Cout)
    B = feat.shape[0]

    # middle_fc3 + avg consensus; pad class dim to 128 lanes for dense stores.
    NC = params["fc_w"].shape[1]
    NCp = _round_up(NC, 128)
    fc_w = jnp.zeros((Cout, NCp), jnp.bfloat16).at[:, :NC].set(
        params["fc_w"].astype(jnp.bfloat16))
    fc_b = jnp.zeros((1, NCp), jnp.float32).at[:, :NC].set(
        params["fc_b"].astype(jnp.float32).reshape(1, NC))

    out = pl.pallas_call(
        _fc_consensus_kernel,
        out_shape=jax.ShapeDtypeStruct((B, 1, NCp), jnp.float32),
        grid=(B,),
        in_specs=[
            pl.BlockSpec((None, num_segments, Cout), lambda b: (b, 0, 0)),
            pl.BlockSpec((Cout, NCp), lambda b: (0, 0)),
            pl.BlockSpec((1, NCp), lambda b: (0, 0)),
        ],
        out_specs=pl.BlockSpec((None, 1, NCp), lambda b: (b, 0, 0)),
        compiler_params=pltpu.CompilerParams(
            dimension_semantics=("parallel",)),
    )(feat, fc_w, fc_b)                                   # (B, 1, NCp)

    return out.reshape(B, NCp)[:, :NC]                    # (B, num_class)


# ----------------------------------------------------------------------------
# Deterministic synthetic parameters
# ----------------------------------------------------------------------------

def init_params(key, c_in, c_out, num_class, dtype=jnp.float32):
    ks = jax.random.split(key, 8)

    def nrm(k, shape, s=0.05):
        return (s * jax.random.normal(k, shape)).astype(dtype)

    def bn(k, c):
        kg, kb, km, kv = jax.random.split(k, 4)
        gamma = (1.0 + 0.1 * jax.random.normal(kg, (c,))).astype(dtype)
        beta = (0.1 * jax.random.normal(kb, (c,))).astype(dtype)
        mean = (0.1 * jax.random.normal(km, (c,))).astype(dtype)
        var = jax.random.uniform(kv, (c,), minval=0.5, maxval=1.5).astype(dtype)
        return (gamma, beta, mean, var)

    scala3 = {
        # torch depthwise weight (C,1,3,3) stored here as (3,3,C)
        "dw1": nrm(ks[0], (3, 3, c_in)),
        # torch 1x1 weight (Cout,Cin,1,1) stored transposed as (Cin,Cout)
        "pw1": nrm(ks[1], (c_in, c_in)),
        "bn1": bn(ks[2], c_in),
        "dw2": nrm(ks[3], (3, 3, c_in)),
        "pw2": nrm(ks[4], (c_in, c_out)),
        "bn2": bn(ks[5], c_out),
    }
    return {
        "scala3": scala3,
        # torch Linear weight (nc, C_out) stored transposed as (C_out, nc)
        "fc_w": nrm(ks[6], (c_out, num_class)),
        "fc_b": nrm(ks[7], (num_class,)),
    }


# ----------------------------------------------------------------------------

if __name__ == "__main__":
    # Scaled-down channels (real model: C_in=1024, C_out=2048), real layer3
    # spatial geometry (14x14 -> 7x7 after the stride-2 SepConv).
    batch = 2
    num_segments = 4
    c_in, c_out = 128, 256
    num_class = 16
    H = W = 14

    key = jax.random.PRNGKey(0)
    k_params, k_x = jax.random.split(key)
    params = init_params(k_params, c_in, c_out, num_class)

    # layer3-shaped feature maps, segments already folded into the batch dim
    x = jax.random.normal(k_x, (batch * num_segments, c_in, H, W), jnp.float32)

    fwd = jax.jit(functools.partial(tsn_middle3_forward,
                                    num_segments=num_segments))
    out = fwd(x, params)
    jax.block_until_ready(out)

    assert out.shape == (batch, num_class), out.shape
    assert out.dtype == jnp.float32
    assert bool(jnp.all(jnp.isfinite(out)))
    print("KERNEL_OK")
</pallas_src>

<mosaic_0001>
module attributes {stable_mosaic.version = 11 : i64} {
  func.func @_sepconv_pool_kernel(%arg0: i32, %arg1: memref<1x4x8x8x128xf32, #tpu.memory_space<vmem>>, %arg2: memref<9x1x128xf32, #tpu.memory_space<vmem>>, %arg3: memref<128x128xbf16, #tpu.memory_space<vmem>>, %arg4: memref<1x128xf32, #tpu.memory_space<vmem>>, %arg5: memref<1x128xf32, #tpu.memory_space<vmem>>, %arg6: memref<9x1x128xf32, #tpu.memory_space<vmem>>, %arg7: memref<128x256xbf16, #tpu.memory_space<vmem>>, %arg8: memref<1x256xf32, #tpu.memory_space<vmem>>, %arg9: memref<1x256xf32, #tpu.memory_space<vmem>>, %arg10: memref<1x1x256xf32, #tpu.memory_space<vmem>>, %arg11: memref<49x128xf32, #tpu.memory_space<vmem>>, %arg12: memref<9x9x128xf32, #tpu.memory_space<vmem>>) attributes {dimension_semantics = [#tpu.dimension_semantics<parallel>], iteration_bounds = array<i64: 8>, scalar_prefetch = 0 : i64, scratch_operands = 2 : i64, tpu.core_type = #tpu.core_type<tc>, window_params = [{transform_indices = @transform_0, window_bounds = array<i64: 1, 4, 8, 8, 128>}, {pipeline_mode = #tpu.pipeline_mode<synchronous>, transform_indices = @transform_1, window_bounds = array<i64: 9, 1, 128>}, {pipeline_mode = #tpu.pipeline_mode<synchronous>, transform_indices = @transform_2, window_bounds = array<i64: 128, 128>}, {pipeline_mode = #tpu.pipeline_mode<synchronous>, transform_indices = @transform_3, window_bounds = array<i64: 1, 128>}, {pipeline_mode = #tpu.pipeline_mode<synchronous>, transform_indices = @transform_4, window_bounds = array<i64: 1, 128>}, {pipeline_mode = #tpu.pipeline_mode<synchronous>, transform_indices = @transform_5, window_bounds = array<i64: 9, 1, 128>}, {pipeline_mode = #tpu.pipeline_mode<synchronous>, transform_indices = @transform_6, window_bounds = array<i64: 128, 256>}, {pipeline_mode = #tpu.pipeline_mode<synchronous>, transform_indices = @transform_7, window_bounds = array<i64: 1, 256>}, {pipeline_mode = #tpu.pipeline_mode<synchronous>, transform_indices = @transform_8, window_bounds = array<i64: 1, 256>}, {transform_indices = @transform_9, window_bounds = array<i64: 1, 1, 256>}]} {
    %c0 = arith.constant 0 : index
    %c0_0 = arith.constant 0 : index
    %c0_1 = arith.constant 0 : index
    %0 = vector.load %arg2[%c0, %c0_0, %c0_1] : memref<9x1x128xf32, #tpu.memory_space<vmem>>, vector<9x1x128xf32>
    %c0_2 = arith.constant 0 : index
    %c0_3 = arith.constant 0 : index
    %c0_4 = arith.constant 0 : index
    %c0_5 = arith.constant 0 : index
    %c0_6 = arith.constant 0 : index
    %1 = vector.load %arg1[%c0_2, %c0_3, %c0_4, %c0_5, %c0_6] : memref<1x4x8x8x128xf32, #tpu.memory_space<vmem>>, vector<1x1x7x7x128xf32>
    %2 = vector.shape_cast %1 : vector<1x1x7x7x128xf32> to vector<7x7x128xf32>
    %3 = vector.extract_strided_slice %0 {offsets = [0, 0, 0], sizes = [1, 1, 128], strides = [1, 1, 1]} : vector<9x1x128xf32> to vector<1x1x128xf32>
    %4 = vector.shape_cast %3 : vector<1x1x128xf32> to vector<1x128xf32>
    %5 = vector.shape_cast %4 : vector<1x128xf32> to vector<1x1x128xf32>
    %6 = vector.broadcast %5 : vector<1x1x128xf32> to vector<7x7x128xf32>
    %7 = arith.mulf %2, %6 : vector<7x7x128xf32>
    %c0_7 = arith.constant 0 : index
    %c1 = arith.constant 1 : index
    %c0_8 = arith.constant 0 : index
    %c0_9 = arith.constant 0 : index
    %c0_10 = arith.constant 0 : index
    %8 = vector.load %arg1[%c0_7, %c1, %c0_8, %c0_9, %c0_10] : memref<1x4x8x8x128xf32, #tpu.memory_space<vmem>>, vector<1x1x7x7x128xf32>
    %9 = vector.shape_cast %8 : vector<1x1x7x7x128xf32> to vector<7x7x128xf32>
    %10 = vector.extract_strided_slice %0 {offsets = [1, 0, 0], sizes = [1, 1, 128], strides = [1, 1, 1]} : vector<9x1x128xf32> to vector<1x1x128xf32>
    %11 = vector.shape_cast %10 : vector<1x1x128xf32> to vector<1x128xf32>
    %12 = vector.shape_cast %11 : vector<1x128xf32> to vector<1x1x128xf32>
    %13 = vector.broadcast %12 : vector<1x1x128xf32> to vector<7x7x128xf32>
    %14 = arith.mulf %9, %13 : vector<7x7x128xf32>
    %15 = arith.addf %7, %14 : vector<7x7x128xf32>
    %c0_11 = arith.constant 0 : index
    %c0_12 = arith.constant 0 : index
    %c0_13 = arith.constant 0 : index
    %c1_14 = arith.constant 1 : index
    %c0_15 = arith.constant 0 : index
    %16 = vector.load %arg1[%c0_11, %c0_12, %c0_13, %c1_14, %c0_15] : memref<1x4x8x8x128xf32, #tpu.memory_space<vmem>>, vector<1x1x7x7x128xf32>
    %17 = vector.shape_cast %16 : vector<1x1x7x7x128xf32> to vector<7x7x128xf32>
    %18 = vector.extract_strided_slice %0 {offsets = [2, 0, 0], sizes = [1, 1, 128], strides = [1, 1, 1]} : vector<9x1x128xf32> to vector<1x1x128xf32>
    %19 = vector.shape_cast %18 : vector<1x1x128xf32> to vector<1x128xf32>
    %20 = vector.shape_cast %19 : vector<1x128xf32> to vector<1x1x128xf32>
    %21 = vector.broadcast %20 : vector<1x1x128xf32> to vector<7x7x128xf32>
    %22 = arith.mulf %17, %21 : vector<7x7x128xf32>
    %23 = arith.addf %15, %22 : vector<7x7x128xf32>
    %c0_16 = arith.constant 0 : index
    %c2 = arith.constant 2 : index
    %c0_17 = arith.constant 0 : index
    %c0_18 = arith.constant 0 : index
    %c0_19 = arith.constant 0 : index
    %24 = vector.load %arg1[%c0_16, %c2, %c0_17, %c0_18, %c0_19] : memref<1x4x8x8x128xf32, #tpu.memory_space<vmem>>, vector<1x1x7x7x128xf32>
    %25 = vector.shape_cast %24 : vector<1x1x7x7x128xf32> to vector<7x7x128xf32>
    %26 = vector.extract_strided_slice %0 {offsets = [3, 0, 0], sizes = [1, 1, 128], strides = [1, 1, 1]} : vector<9x1x128xf32> to vector<1x1x128xf32>
    %27 = vector.shape_cast %26 : vector<1x1x128xf32> to vector<1x128xf32>
    %28 = vector.shape_cast %27 : vector<1x128xf32> to vector<1x1x128xf32>
    %29 = vector.broadcast %28 : vector<1x1x128xf32> to vector<7x7x128xf32>
    %30 = arith.mulf %25, %29 : vector<7x7x128xf32>
    %31 = arith.addf %23, %30 : vector<7x7x128xf32>
    %c0_20 = arith.constant 0 : index
    %c3 = arith.constant 3 : index
    %c0_21 = arith.constant 0 : index
    %c0_22 = arith.constant 0 : index
    %c0_23 = arith.constant 0 : index
    %32 = vector.load %arg1[%c0_20, %c3, %c0_21, %c0_22, %c0_23] : memref<1x4x8x8x128xf32, #tpu.memory_space<vmem>>, vector<1x1x7x7x128xf32>
    %33 = vector.shape_cast %32 : vector<1x1x7x7x128xf32> to vector<7x7x128xf32>
    %34 = vector.extract_strided_slice %0 {offsets = [4, 0, 0], sizes = [1, 1, 128], strides = [1, 1, 1]} : vector<9x1x128xf32> to vector<1x1x128xf32>
    %35 = vector.shape_cast %34 : vector<1x1x128xf32> to vector<1x128xf32>
    %36 = vector.shape_cast %35 : vector<1x128xf32> to vector<1x1x128xf32>
    %37 = vector.broadcast %36 : vector<1x1x128xf32> to vector<7x7x128xf32>
    %38 = arith.mulf %33, %37 : vector<7x7x128xf32>
    %39 = arith.addf %31, %38 : vector<7x7x128xf32>
    %c0_24 = arith.constant 0 : index
    %c2_25 = arith.constant 2 : index
    %c0_26 = arith.constant 0 : index
    %c1_27 = arith.constant 1 : index
    %c0_28 = arith.constant 0 : index
    %40 = vector.load %arg1[%c0_24, %c2_25, %c0_26, %c1_27, %c0_28] : memref<1x4x8x8x128xf32, #tpu.memory_space<vmem>>, vector<1x1x7x7x128xf32>
    %41 = vector.shape_cast %40 : vector<1x1x7x7x128xf32> to vector<7x7x128xf32>
    %42 = vector.extract_strided_slice %0 {offsets = [5, 0, 0], sizes = [1, 1, 128], strides = [1, 1, 1]} : vector<9x1x128xf32> to vector<1x1x128xf32>
    %43 = vector.shape_cast %42 : vector<1x1x128xf32> to vector<1x128xf32>
    %44 = vector.shape_cast %43 : vector<1x128xf32> to vector<1x1x128xf32>
    %45 = vector.broadcast %44 : vector<1x1x128xf32> to vector<7x7x128xf32>
    %46 = arith.mulf %41, %45 : vector<7x7x128xf32>
    %47 = arith.addf %39, %46 : vector<7x7x128xf32>
    %c0_29 = arith.constant 0 : index
    %c0_30 = arith.constant 0 : index
    %c1_31 = arith.constant 1 : index
    %c0_32 = arith.constant 0 : index
    %c0_33 = arith.constant 0 : index
    %48 = vector.load %arg1[%c0_29, %c0_30, %c1_31, %c0_32, %c0_33] : memref<1x4x8x8x128xf32, #tpu.memory_space<vmem>>, vector<1x1x7x7x128xf32>
    %49 = vector.shape_cast %48 : vector<1x1x7x7x128xf32> to vector<7x7x128xf32>
    %50 = vector.extract_strided_slice %0 {offsets = [6, 0, 0], sizes = [1, 1, 128], strides = [1, 1, 1]} : vector<9x1x128xf32> to vector<1x1x128xf32>
    %51 = vector.shape_cast %50 : vector<1x1x128xf32> to vector<1x128xf32>
    %52 = vector.shape_cast %51 : vector<1x128xf32> to vector<1x1x128xf32>
    %53 = vector.broadcast %52 : vector<1x1x128xf32> to vector<7x7x128xf32>
    %54 = arith.mulf %49, %53 : vector<7x7x128xf32>
    %55 = arith.addf %47, %54 : vector<7x7x128xf32>
    %c0_34 = arith.constant 0 : index
    %c1_35 = arith.constant 1 : index
    %c1_36 = arith.constant 1 : index
    %c0_37 = arith.constant 0 : index
    %c0_38 = arith.constant 0 : index
    %56 = vector.load %arg1[%c0_34, %c1_35, %c1_36, %c0_37, %c0_38] : memref<1x4x8x8x128xf32, #tpu.memory_space<vmem>>, vector<1x1x7x7x128xf32>
    %57 = vector.shape_cast %56 : vector<1x1x7x7x128xf32> to vector<7x7x128xf32>
    %58 = vector.extract_strided_slice %0 {offsets = [7, 0, 0], sizes = [1, 1, 128], strides = [1, 1, 1]} : vector<9x1x128xf32> to vector<1x1x128xf32>
    %59 = vector.shape_cast %58 : vector<1x1x128xf32> to vector<1x128xf32>
    %60 = vector.shape_cast %59 : vector<1x128xf32> to vector<1x1x128xf32>
    %61 = vector.broadcast %60 : vector<1x1x128xf32> to vector<7x7x128xf32>
    %62 = arith.mulf %57, %61 : vector<7x7x128xf32>
    %63 = arith.addf %55, %62 : vector<7x7x128xf32>
    %c0_39 = arith.constant 0 : index
    %c0_40 = arith.constant 0 : index
    %c1_41 = arith.constant 1 : index
    %c1_42 = arith.constant 1 : index
    %c0_43 = arith.constant 0 : index
    %64 = vector.load %arg1[%c0_39, %c0_40, %c1_41, %c1_42, %c0_43] : memref<1x4x8x8x128xf32, #tpu.memory_space<vmem>>, vector<1x1x7x7x128xf32>
    %65 = vector.shape_cast %64 : vector<1x1x7x7x128xf32> to vector<7x7x128xf32>
    %66 = vector.extract_strided_slice %0 {offsets = [8, 0, 0], sizes = [1, 1, 128], strides = [1, 1, 1]} : vector<9x1x128xf32> to vector<1x1x128xf32>
    %67 = vector.shape_cast %66 : vector<1x1x128xf32> to vector<1x128xf32>
    %68 = vector.shape_cast %67 : vector<1x128xf32> to vector<1x1x128xf32>
    %69 = vector.broadcast %68 : vector<1x1x128xf32> to vector<7x7x128xf32>
    %70 = arith.mulf %65, %69 : vector<7x7x128xf32>
    %71 = arith.addf %63, %70 : vector<7x7x128xf32>
    %72 = vector.extract_strided_slice %71 {offsets = [0, 0, 0], sizes = [1, 7, 128], strides = [1, 1, 1]} : vector<7x7x128xf32> to vector<1x7x128xf32>
    %73 = vector.shape_cast %72 : vector<1x7x128xf32> to vector<7x128xf32>
    %c0_44 = arith.constant 0 : index
    %c0_45 = arith.constant 0 : index
    %74 = vector.load %arg11[%c0_44, %c0_45] : memref<49x128xf32, #tpu.memory_space<vmem>>, vector<7x128xf32>
    tpu.vector_store %arg11[%c0_44, %c0_45], %73 {strides = array<i32>} : memref<49x128xf32, #tpu.memory_space<vmem>>, vector<7x128xf32>,
    %75 = vector.extract_strided_slice %71 {offsets = [1, 0, 0], sizes = [1, 7, 128], strides = [1, 1, 1]} : vector<7x7x128xf32> to vector<1x7x128xf32>
    %76 = vector.shape_cast %75 : vector<1x7x128xf32> to vector<7x128xf32>
    %c7 = arith.constant 7 : index
    %c0_46 = arith.constant 0 : index
    %77 = vector.load %arg11[%c7, %c0_46] : memref<49x128xf32, #tpu.memory_space<vmem>>, vector<7x128xf32>
    tpu.vector_store %arg11[%c7, %c0_46], %76 {strides = array<i32>} : memref<49x128xf32, #tpu.memory_space<vmem>>, vector<7x128xf32>,
    %78 = vector.extract_strided_slice %71 {offsets = [2, 0, 0], sizes = [1, 7, 128], strides = [1, 1, 1]} : vector<7x7x128xf32> to vector<1x7x128xf32>
    %79 = vector.shape_cast %78 : vector<1x7x128xf32> to vector<7x128xf32>
    %c14 = arith.constant 14 : index
    %c0_47 = arith.constant 0 : index
    %80 = vector.load %arg11[%c14, %c0_47] : memref<49x128xf32, #tpu.memory_space<vmem>>, vector<7x128xf32>
    tpu.vector_store %arg11[%c14, %c0_47], %79 {strides = array<i32>} : memref<49x128xf32, #tpu.memory_space<vmem>>, vector<7x128xf32>,
    %81 = vector.extract_strided_slice %71 {offsets = [3, 0, 0], sizes = [1, 7, 128], strides = [1, 1, 1]} : vector<7x7x128xf32> to vector<1x7x128xf32>
    %82 = vector.shape_cast %81 : vector<1x7x128xf32> to vector<7x128xf32>
    %c21 = arith.constant 21 : index
    %c0_48 = arith.constant 0 : index
    %83 = vector.load %arg11[%c21, %c0_48] : memref<49x128xf32, #tpu.memory_space<vmem>>, vector<7x128xf32>
    tpu.vector_store %arg11[%c21, %c0_48], %82 {strides = array<i32>} : memref<49x128xf32, #tpu.memory_space<vmem>>, vector<7x128xf32>,
    %84 = vector.extract_strided_slice %71 {offsets = [4, 0, 0], sizes = [1, 7, 128], strides = [1, 1, 1]} : vector<7x7x128xf32> to vector<1x7x128xf32>
    %85 = vector.shape_cast %84 : vector<1x7x128xf32> to vector<7x128xf32>
    %c28 = arith.constant 28 : index
    %c0_49 = arith.constant 0 : index
    %86 = vector.load %arg11[%c28, %c0_49] : memref<49x128xf32, #tpu.memory_space<vmem>>, vector<7x128xf32>
    tpu.vector_store %arg11[%c28, %c0_49], %85 {strides = array<i32>} : memref<49x128xf32, #tpu.memory_space<vmem>>, vector<7x128xf32>,
    %87 = vector.extract_strided_slice %71 {offsets = [5, 0, 0], sizes = [1, 7, 128], strides = [1, 1, 1]} : vector<7x7x128xf32> to vector<1x7x128xf32>
    %88 = vector.shape_cast %87 : vector<1x7x128xf32> to vector<7x128xf32>
    %c35 = arith.constant 35 : index
    %c0_50 = arith.constant 0 : index
    %89 = vector.load %arg11[%c35, %c0_50] : memref<49x128xf32, #tpu.memory_space<vmem>>, vector<7x128xf32>
    tpu.vector_store %arg11[%c35, %c0_50], %88 {strides = array<i32>} : memref<49x128xf32, #tpu.memory_space<vmem>>, vector<7x128xf32>,
    %90 = vector.extract_strided_slice %71 {offsets = [6, 0, 0], sizes = [1, 7, 128], strides = [1, 1, 1]} : vector<7x7x128xf32> to vector<1x7x128xf32>
    %91 = vector.shape_cast %90 : vector<1x7x128xf32> to vector<7x128xf32>
    %c42 = arith.constant 42 : index
    %c0_51 = arith.constant 0 : index
    %92 = vector.load %arg11[%c42, %c0_51] : memref<49x128xf32, #tpu.memory_space<vmem>>, vector<7x128xf32>
    tpu.vector_store %arg11[%c42, %c0_51], %91 {strides = array<i32>} : memref<49x128xf32, #tpu.memory_space<vmem>>, vector<7x128xf32>,
    %c0_52 = arith.constant 0 : index
    %c0_53 = arith.constant 0 : index
    %93 = vector.load %arg11[%c0_52, %c0_53] : memref<49x128xf32, #tpu.memory_space<vmem>>, vector<49x128xf32>
    %94 = arith.truncf %93 : vector<49x128xf32> to vector<49x128xbf16>
    %c0_54 = arith.constant 0 : index
    %c0_55 = arith.constant 0 : index
    %95 = vector.load %arg3[%c0_54, %c0_55] : memref<128x128xbf16, #tpu.memory_space<vmem>>, vector<128x128xbf16>
    %cst = arith.constant dense<0.000000e+00> : vector<49x128xf32>
    %96 = tpu.matmul %94, %95, %cst {dimension_numbers = #tpu.dot_dimension_numbers<[1], [0], [0], [1], [0, 0, 1, 1], [], []>} : vector<49x128xbf16>, vector<128x128xbf16>, vector<49x128xf32> -> vector<49x128xf32>
    %c0_56 = arith.constant 0 : index
    %c0_57 = arith.constant 0 : index
    %97 = vector.load %arg4[%c0_56, %c0_57] : memref<1x128xf32, #tpu.memory_space<vmem>>, vector<1x128xf32>
    %98 = vector.broadcast %97 : vector<1x128xf32> to vector<49x128xf32>
    %99 = arith.mulf %96, %98 : vector<49x128xf32>
    %c0_58 = arith.constant 0 : index
    %c0_59 = arith.constant 0 : index
    %100 = vector.load %arg5[%c0_58, %c0_59] : memref<1x128xf32, #tpu.memory_space<vmem>>, vector<1x128xf32>
    %101 = vector.broadcast %100 : vector<1x128xf32> to vector<49x128xf32>
    %102 = arith.addf %99, %101 : vector<49x128xf32>
    %cst_60 = arith.constant 0.000000e+00 : f32
    %103 = vector.broadcast %cst_60 : f32 to vector<49x128xf32>
    %104 = arith.maximumf %102, %103 : vector<49x128xf32>
    %cst_61 = arith.constant 0.000000e+00 : f32
    %105 = vector.broadcast %cst_61 : f32 to vector<9x9x128xf32>
    %c0_62 = arith.constant 0 : index
    %c0_63 = arith.constant 0 : index
    %c0_64 = arith.constant 0 : index
    %106 = vector.load %arg12[%c0_62, %c0_63, %c0_64] : memref<9x9x128xf32, #tpu.memory_space<vmem>>, vector<9x9x128xf32>
    tpu.vector_store %arg12[%c0_62, %c0_63, %c0_64], %105 {strides = array<i32>} : memref<9x9x128xf32, #tpu.memory_space<vmem>>, vector<9x9x128xf32>,
    %107 = vector.extract_strided_slice %104 {offsets = [0, 0], sizes = [7, 128], strides = [1, 1]} : vector<49x128xf32> to vector<7x128xf32>
    %108 = vector.shape_cast %107 : vector<7x128xf32> to vector<1x7x128xf32>
    %c1_65 = arith.constant 1 : index
    %c1_66 = arith.constant 1 : index
    %c0_67 = arith.constant 0 : index
    %109 = vector.load %arg12[%c1_65, %c1_66, %c0_67] : memref<9x9x128xf32, #tpu.memory_space<vmem>>, vector<1x7x128xf32>
    tpu.vector_store %arg12[%c1_65, %c1_66, %c0_67], %108 {strides = array<i32>} : memref<9x9x128xf32, #tpu.memory_space<vmem>>, vector<1x7x128xf32>,
    %110 = vector.extract_strided_slice %104 {offsets = [7, 0], sizes = [7, 128], strides = [1, 1]} : vector<49x128xf32> to vector<7x128xf32>
    %111 = vector.shape_cast %110 : vector<7x128xf32> to vector<1x7x128xf32>
    %c2_68 = arith.constant 2 : index
    %c1_69 = arith.constant 1 : index
    %c0_70 = arith.constant 0 : index
    %112 = vector.load %arg12[%c2_68, %c1_69, %c0_70] : memref<9x9x128xf32, #tpu.memory_space<vmem>>, vector<1x7x128xf32>
    tpu.vector_store %arg12[%c2_68, %c1_69, %c0_70], %111 {strides = array<i32>} : memref<9x9x128xf32, #tpu.memory_space<vmem>>, vector<1x7x128xf32>,
    %113 = vector.extract_strided_slice %104 {offsets = [14, 0], sizes = [7, 128], strides = [1, 1]} : vector<49x128xf32> to vector<7x128xf32>
    %114 = vector.shape_cast %113 : vector<7x128xf32> to vector<1x7x128xf32>
    %c3_71 = arith.constant 3 : index
    %c1_72 = arith.constant 1 : index
    %c0_73 = arith.constant 0 : index
    %115 = vector.load %arg12[%c3_71, %c1_72, %c0_73] : memref<9x9x128xf32, #tpu.memory_space<vmem>>, vector<1x7x128xf32>
    tpu.vector_store %arg12[%c3_71, %c1_72, %c0_73], %114 {strides = array<i32>} : memref<9x9x128xf32, #tpu.memory_space<vmem>>, vector<1x7x128xf32>,
    %116 = vector.extract_strided_slice %104 {offsets = [21, 0], sizes = [7, 128], strides = [1, 1]} : vector<49x128xf32> to vector<7x128xf32>
    %117 = vector.shape_cast %116 : vector<7x128xf32> to vector<1x7x128xf32>
    %c4 = arith.constant 4 : index
    %c1_74 = arith.constant 1 : index
    %c0_75 = arith.constant 0 : index
    %118 = vector.load %arg12[%c4, %c1_74, %c0_75] : memref<9x9x128xf32, #tpu.memory_space<vmem>>, vector<1x7x128xf32>
    tpu.vector_store %arg12[%c4, %c1_74, %c0_75], %117 {strides = array<i32>} : memref<9x9x128xf32, #tpu.memory_space<vmem>>, vector<1x7x128xf32>,
    %119 = vector.extract_strided_slice %104 {offsets = [28, 0], sizes = [7, 128], strides = [1, 1]} : vector<49x128xf32> to vector<7x128xf32>
    %120 = vector.shape_cast %119 : vector<7x128xf32> to vector<1x7x128xf32>
    %c5 = arith.constant 5 : index
    %c1_76 = arith.constant 1 : index
    %c0_77 = arith.constant 0 : index
    %121 = vector.load %arg12[%c5, %c1_76, %c0_77] : memref<9x9x128xf32, #tpu.memory_space<vmem>>, vector<1x7x128xf32>
    tpu.vector_store %arg12[%c5, %c1_76, %c0_77], %120 {strides = array<i32>} : memref<9x9x128xf32, #tpu.memory_space<vmem>>, vector<1x7x128xf32>,
    %122 = vector.extract_strided_slice %104 {offsets = [35, 0], sizes = [7, 128], strides = [1, 1]} : vector<49x128xf32> to vector<7x128xf32>
    %123 = vector.shape_cast %122 : vector<7x128xf32> to vector<1x7x128xf32>
    %c6 = arith.constant 6 : index
    %c1_78 = arith.constant 1 : index
    %c0_79 = arith.constant 0 : index
    %124 = vector.load %arg12[%c6, %c1_78, %c0_79] : memref<9x9x128xf32, #tpu.memory_space<vmem>>, vector<1x7x128xf32>
    tpu.vector_store %arg12[%c6, %c1_78, %c0_79], %123 {strides = array<i32>} : memref<9x9x128xf32, #tpu.memory_space<vmem>>, vector<1x7x128xf32>,
    %125 = vector.extract_strided_slice %104 {offsets = [42, 0], sizes = [7, 128], strides = [1, 1]} : vector<49x128xf32> to vector<7x128xf32>
    %126 = vector.shape_cast %125 : vector<7x128xf32> to vector<1x7x128xf32>
    %c7_80 = arith.constant 7 : index
    %c1_81 = arith.constant 1 : index
    %c0_82 = arith.constant 0 : index
    %127 = vector.load %arg12[%c7_80, %c1_81, %c0_82] : memref<9x9x128xf32, #tpu.memory_space<vmem>>, vector<1x7x128xf32>
    tpu.vector_store %arg12[%c7_80, %c1_81, %c0_82], %126 {strides = array<i32>} : memref<9x9x128xf32, #tpu.memory_space<vmem>>, vector<1x7x128xf32>,
    %c0_83 = arith.constant 0 : index
    %c0_84 = arith.constant 0 : index
    %c0_85 = arith.constant 0 : index
    %128 = vector.load %arg6[%c0_83, %c0_84, %c0_85] : memref<9x1x128xf32, #tpu.memory_space<vmem>>, vector<9x1x128xf32>
    %c0_86 = arith.constant 0 : index
    %c0_87 = arith.constant 0 : index
    %c0_88 = arith.constant 0 : index
    %129 = vector.load %arg12[%c0_86, %c0_87, %c0_88] : memref<9x9x128xf32, #tpu.memory_space<vmem>>, vector<7x7x128xf32>
    %130 = vector.extract_strided_slice %128 {offsets = [0, 0, 0], sizes = [1, 1, 128], strides = [1, 1, 1]} : vector<9x1x128xf32> to vector<1x1x128xf32>
    %131 = vector.shape_cast %130 : vector<1x1x128xf32> to vector<1x128xf32>
    %132 = vector.shape_cast %131 : vector<1x128xf32> to vector<1x1x128xf32>
    %133 = vector.broadcast %132 : vector<1x1x128xf32> to vector<7x7x128xf32>
    %134 = arith.mulf %129, %133 : vector<7x7x128xf32>
    %c0_89 = arith.constant 0 : index
    %c1_90 = arith.constant 1 : index
    %c0_91 = arith.constant 0 : index
    %135 = vector.load %arg12[%c0_89, %c1_90, %c0_91] : memref<9x9x128xf32, #tpu.memory_space<vmem>>, vector<7x7x128xf32>
    %136 = vector.extract_strided_slice %128 {offsets = [1, 0, 0], sizes = [1, 1, 128], strides = [1, 1, 1]} : vector<9x1x128xf32> to vector<1x1x128xf32>
    %137 = vector.shape_cast %136 : vector<1x1x128xf32> to vector<1x128xf32>
    %138 = vector.shape_cast %137 : vector<1x128xf32> to vector<1x1x128xf32>
    %139 = vector.broadcast %138 : vector<1x1x128xf32> to vector<7x7x128xf32>
    %140 = arith.mulf %135, %139 : vector<7x7x128xf32>
    %141 = arith.addf %134, %140 : vector<7x7x128xf32>
    %c0_92 = arith.constant 0 : index
    %c2_93 = arith.constant 2 : index
    %c0_94 = arith.constant 0 : index
    %142 = vector.load %arg12[%c0_92, %c2_93, %c0_94] : memref<9x9x128xf32, #tpu.memory_space<vmem>>, vector<7x7x128xf32>
    %143 = vector.extract_strided_slice %128 {offsets = [2, 0, 0], sizes = [1, 1, 128], strides = [1, 1, 1]} : vector<9x1x128xf32> to vector<1x1x128xf32>
    %144 = vector.shape_cast %143 : vector<1x1x128xf32> to vector<1x128xf32>
    %145 = vector.shape_cast %144 : vector<1x128xf32> to vector<1x1x128xf32>
    %146 = vector.broadcast %145 : vector<1x1x128xf32> to vector<7x7x128xf32>
    %147 = arith.mulf %142, %146 : vector<7x7x128xf32>
    %148 = arith.addf %141, %147 : vector<7x7x128xf32>
    %c1_95 = arith.constant 1 : index
    %c0_96 = arith.constant 0 : index
    %c0_97 = arith.constant 0 : index
    %149 = vector.load %arg12[%c1_95, %c0_96, %c0_97] : memref<9x9x128xf32, #tpu.memory_space<vmem>>, vector<7x7x128xf32>
    %150 = vector.extract_strided_slice %128 {offsets = [3, 0, 0], sizes = [1, 1, 128], strides = [1, 1, 1]} : vector<9x1x128xf32> to vector<1x1x128xf32>
    %151 = vector.shape_cast %150 : vector<1x1x128xf32> to vector<1x128xf32>
    %152 = vector.shape_cast %151 : vector<1x128xf32> to vector<1x1x128xf32>
    %153 = vector.broadcast %152 : vector<1x1x128xf32> to vector<7x7x128xf32>
    %154 = arith.mulf %149, %153 : vector<7x7x128xf32>
    %155 = arith.addf %148, %154 : vector<7x7x128xf32>
    %c1_98 = arith.constant 1 : index
    %c1_99 = arith.constant 1 : index
    %c0_100 = arith.constant 0 : index
    %156 = vector.load %arg12[%c1_98, %c1_99, %c0_100] : memref<9x9x128xf32, #tpu.memory_space<vmem>>, vector<7x7x128xf32>
    %157 = vector.extract_strided_slice %128 {offsets = [4, 0, 0], sizes = [1, 1, 128], strides = [1, 1, 1]} : vector<9x1x128xf32> to vector<1x1x128xf32>
    %158 = vector.shape_cast %157 : vector<1x1x128xf32> to vector<1x128xf32>
    %159 = vector.shape_cast %158 : vector<1x128xf32> to vector<1x1x128xf32>
    %160 = vector.broadcast %159 : vector<1x1x128xf32> to vector<7x7x128xf32>
    %161 = arith.mulf %156, %160 : vector<7x7x128xf32>
    %162 = arith.addf %155, %161 : vector<7x7x128xf32>
    %c1_101 = arith.constant 1 : index
    %c2_102 = arith.constant 2 : index
    %c0_103 = arith.constant 0 : index
    %163 = vector.load %arg12[%c1_101, %c2_102, %c0_103] : memref<9x9x128xf32, #tpu.memory_space<vmem>>, vector<7x7x128xf32>
    %164 = vector.extract_strided_slice %128 {offsets = [5, 0, 0], sizes = [1, 1, 128], strides = [1, 1, 1]} : vector<9x1x128xf32> to vector<1x1x128xf32>
    %165 = vector.shape_cast %164 : vector<1x1x128xf32> to vector<1x128xf32>
    %166 = vector.shape_cast %165 : vector<1x128xf32> to vector<1x1x128xf32>
    %167 = vector.broadcast %166 : vector<1x1x128xf32> to vector<7x7x128xf32>
    %168 = arith.mulf %163, %167 : vector<7x7x128xf32>
    %169 = arith.addf %162, %168 : vector<7x7x128xf32>
    %c2_104 = arith.constant 2 : index
    %c0_105 = arith.constant 0 : index
    %c0_106 = arith.constant 0 : index
    %170 = vector.load %arg12[%c2_104, %c0_105, %c0_106] : memref<9x9x128xf32, #tpu.memory_space<vmem>>, vector<7x7x128xf32>
    %171 = vector.extract_strided_slice %128 {offsets = [6, 0, 0], sizes = [1, 1, 128], strides = [1, 1, 1]} : vector<9x1x128xf32> to vector<1x1x128xf32>
    %172 = vector.shape_cast %171 : vector<1x1x128xf32> to vector<1x128xf32>
    %173 = vector.shape_cast %172 : vector<1x128xf32> to vector<1x1x128xf32>
    %174 = vector.broadcast %173 : vector<1x1x128xf32> to vector<7x7x128xf32>
    %175 = arith.mulf %170, %174 : vector<7x7x128xf32>
    %176 = arith.addf %169, %175 : vector<7x7x128xf32>
    %c2_107 = arith.constant 2 : index
    %c1_108 = arith.constant 1 : index
    %c0_109 = arith.constant 0 : index
    %177 = vector.load %arg12[%c2_107, %c1_108, %c0_109] : memref<9x9x128xf32, #tpu.memory_space<vmem>>, vector<7x7x128xf32>
    %178 = vector.extract_strided_slice %128 {offsets = [7, 0, 0], sizes = [1, 1, 128], strides = [1, 1, 1]} : vector<9x1x128xf32> to vector<1x1x128xf32>
    %179 = vector.shape_cast %178 : vector<1x1x128xf32> to vector<1x128xf32>
    %180 = vector.shape_cast %179 : vector<1x128xf32> to vector<1x1x128xf32>
    %181 = vector.broadcast %180 : vector<1x1x128xf32> to vector<7x7x128xf32>
    %182 = arith.mulf %177, %181 : vector<7x7x128xf32>
    %183 = arith.addf %176, %182 : vector<7x7x128xf32>
    %c2_110 = arith.constant 2 : index
    %c2_111 = arith.constant 2 : index
    %c0_112 = arith.constant 0 : index
    %184 = vector.load %arg12[%c2_110, %c2_111, %c0_112] : memref<9x9x128xf32, #tpu.memory_space<vmem>>, vector<7x7x128xf32>
    %185 = vector.extract_strided_slice %128 {offsets = [8, 0, 0], sizes = [1, 1, 128], strides = [1, 1, 1]} : vector<9x1x128xf32> to vector<1x1x128xf32>
    %186 = vector.shape_cast %185 : vector<1x1x128xf32> to vector<1x128xf32>
    %187 = vector.shape_cast %186 : vector<1x128xf32> to vector<1x1x128xf32>
    %188 = vector.broadcast %187 : vector<1x1x128xf32> to vector<7x7x128xf32>
    %189 = arith.mulf %184, %188 : vector<7x7x128xf32>
    %190 = arith.addf %183, %189 : vector<7x7x128xf32>
    %191 = vector.extract_strided_slice %190 {offsets = [0, 0, 0], sizes = [1, 7, 128], strides = [1, 1, 1]} : vector<7x7x128xf32> to vector<1x7x128xf32>
    %192 = vector.shape_cast %191 : vector<1x7x128xf32> to vector<7x128xf32>
    %c0_113 = arith.constant 0 : index
    %c0_114 = arith.constant 0 : index
    %193 = vector.load %arg11[%c0_113, %c0_114] : memref<49x128xf32, #tpu.memory_space<vmem>>, vector<7x128xf32>
    tpu.vector_store %arg11[%c0_113, %c0_114], %192 {strides = array<i32>} : memref<49x128xf32, #tpu.memory_space<vmem>>, vector<7x128xf32>,
    %194 = vector.extract_strided_slice %190 {offsets = [1, 0, 0], sizes = [1, 7, 128], strides = [1, 1, 1]} : vector<7x7x128xf32> to vector<1x7x128xf32>
    %195 = vector.shape_cast %194 : vector<1x7x128xf32> to vector<7x128xf32>
    %c7_115 = arith.constant 7 : index
    %c0_116 = arith.constant 0 : index
    %196 = vector.load %arg11[%c7_115, %c0_116] : memref<49x128xf32, #tpu.memory_space<vmem>>, vector<7x128xf32>
    tpu.vector_store %arg11[%c7_115, %c0_116], %195 {strides = array<i32>} : memref<49x128xf32, #tpu.memory_space<vmem>>, vector<7x128xf32>,
    %197 = vector.extract_strided_slice %190 {offsets = [2, 0, 0], sizes = [1, 7, 128], strides = [1, 1, 1]} : vector<7x7x128xf32> to vector<1x7x128xf32>
    %198 = vector.shape_cast %197 : vector<1x7x128xf32> to vector<7x128xf32>
    %c14_117 = arith.constant 14 : index
    %c0_118 = arith.constant 0 : index
    %199 = vector.load %arg11[%c14_117, %c0_118] : memref<49x128xf32, #tpu.memory_space<vmem>>, vector<7x128xf32>
    tpu.vector_store %arg11[%c14_117, %c0_118], %198 {strides = array<i32>} : memref<49x128xf32, #tpu.memory_space<vmem>>, vector<7x128xf32>,
    %200 = vector.extract_strided_slice %190 {offsets = [3, 0, 0], sizes = [1, 7, 128], strides = [1, 1, 1]} : vector<7x7x128xf32> to vector<1x7x128xf32>
    %201 = vector.shape_cast %200 : vector<1x7x128xf32> to vector<7x128xf32>
    %c21_119 = arith.constant 21 : index
    %c0_120 = arith.constant 0 : index
    %202 = vector.load %arg11[%c21_119, %c0_120] : memref<49x128xf32, #tpu.memory_space<vmem>>, vector<7x128xf32>
    tpu.vector_store %arg11[%c21_119, %c0_120], %201 {strides = array<i32>} : memref<49x128xf32, #tpu.memory_space<vmem>>, vector<7x128xf32>,
    %203 = vector.extract_strided_slice %190 {offsets = [4, 0, 0], sizes = [1, 7, 128], strides = [1, 1, 1]} : vector<7x7x128xf32> to vector<1x7x128xf32>
    %204 = vector.shape_cast %203 : vector<1x7x128xf32> to vector<7x128xf32>
    %c28_121 = arith.constant 28 : index
    %c0_122 = arith.constant 0 : index
    %205 = vector.load %arg11[%c28_121, %c0_122] : memref<49x128xf32, #tpu.memory_space<vmem>>, vector<7x128xf32>
    tpu.vector_store %arg11[%c28_121, %c0_122], %204 {strides = array<i32>} : memref<49x128xf32, #tpu.memory_space<vmem>>, vector<7x128xf32>,
    %206 = vector.extract_strided_slice %190 {offsets = [5, 0, 0], sizes = [1, 7, 128], strides = [1, 1, 1]} : vector<7x7x128xf32> to vector<1x7x128xf32>
    %207 = vector.shape_cast %206 : vector<1x7x128xf32> to vector<7x128xf32>
    %c35_123 = arith.constant 35 : index
    %c0_124 = arith.constant 0 : index
    %208 = vector.load %arg11[%c35_123, %c0_124] : memref<49x128xf32, #tpu.memory_space<vmem>>, vector<7x128xf32>
    tpu.vector_store %arg11[%c35_123, %c0_124], %207 {strides = array<i32>} : memref<49x128xf32, #tpu.memory_space<vmem>>, vector<7x128xf32>,
    %209 = vector.extract_strided_slice %190 {offsets = [6, 0, 0], sizes = [1, 7, 128], strides = [1, 1, 1]} : vector<7x7x128xf32> to vector<1x7x128xf32>
    %210 = vector.shape_cast %209 : vector<1x7x128xf32> to vector<7x128xf32>
    %c42_125 = arith.constant 42 : index
    %c0_126 = arith.constant 0 : index
    %211 = vector.load %arg11[%c42_125, %c0_126] : memref<49x128xf32, #tpu.memory_space<vmem>>, vector<7x128xf32>
    tpu.vector_store %arg11[%c42_125, %c0_126], %210 {strides = array<i32>} : memref<49x128xf32, #tpu.memory_space<vmem>>, vector<7x128xf32>,
    %c0_127 = arith.constant 0 : index
    %c0_128 = arith.constant 0 : index
    %212 = vector.load %arg11[%c0_127, %c0_128] : memref<49x128xf32, #tpu.memory_space<vmem>>, vector<49x128xf32>
    %213 = arith.truncf %212 : vector<49x128xf32> to vector<49x128xbf16>
    %c0_129 = arith.constant 0 : index
    %c0_130 = arith.constant 0 : index
    %214 = vector.load %arg7[%c0_129, %c0_130] : memref<128x256xbf16, #tpu.memory_space<vmem>>, vector<128x256xbf16>
    %cst_131 = arith.constant dense<0.000000e+00> : vector<49x256xf32>
    %215 = tpu.matmul %213, %214, %cst_131 {dimension_numbers = #tpu.dot_dimension_numbers<[1], [0], [0], [1], [0, 0, 1, 1], [], []>} : vector<49x128xbf16>, vector<128x256xbf16>, vector<49x256xf32> -> vector<49x256xf32>
    %c0_132 = arith.constant 0 : index
    %c0_133 = arith.constant 0 : index
    %216 = vector.load %arg8[%c0_132, %c0_133] : memref<1x256xf32, #tpu.memory_space<vmem>>, vector<1x256xf32>
    %217 = vector.broadcast %216 : vector<1x256xf32> to vector<49x256xf32>
    %218 = arith.mulf %215, %217 : vector<49x256xf32>
    %c0_134 = arith.constant 0 : index
    %c0_135 = arith.constant 0 : index
    %219 = vector.load %arg9[%c0_134, %c0_135] : memref<1x256xf32, #tpu.memory_space<vmem>>, vector<1x256xf32>
    %220 = vector.broadcast %219 : vector<1x256xf32> to vector<49x256xf32>
    %221 = arith.addf %218, %220 : vector<49x256xf32>
    %cst_136 = arith.constant 0.000000e+00 : f32
    %222 = vector.broadcast %cst_136 : f32 to vector<49x256xf32>
    %223 = arith.maximumf %221, %222 : vector<49x256xf32>
    %cst_137 = arith.constant dense<0.000000e+00> : vector<256xf32>
    %224 = vector.multi_reduction <add>, %223, %cst_137 [0] : vector<49x256xf32> to vector<256xf32>
    %225 = vector.shape_cast %224 : vector<256xf32> to vector<1x256xf32>
    %cst_138 = arith.constant 4.900000e+01 : f32
    %226 = vector.broadcast %cst_138 : f32 to vector<1x256xf32>
    %227 = arith.divf %225, %226 : vector<1x256xf32>
    %c0_139 = arith.constant 0 : index
    %c0_140 = arith.constant 0 : index
    %c0_141 = arith.constant 0 : index
    %228 = vector.load %arg10[%c0_139, %c0_140, %c0_141] : memref<1x1x256xf32, #tpu.memory_space<vmem>>, vector<1x1x256xf32>
    %229 = vector.shape_cast %228 : vector<1x1x256xf32> to vector<1x256xf32>
    %230 = vector.shape_cast %227 : vector<1x256xf32> to vector<1x1x256xf32>
    tpu.vector_store %arg10[%c0_139, %c0_140, %c0_141], %230 {strides = array<i32>} : memref<1x1x256xf32, #tpu.memory_space<vmem>>, vector<1x1x256xf32>,
    return
  }
  func.func @transform_0(%arg0: i32) -> (i32, i32, i32, i32, i32) {
    %c0_i32 = arith.constant 0 : i32
    %c0_i32_0 = arith.constant 0 : i32
    %c0_i32_1 = arith.constant 0 : i32
    %c0_i32_2 = arith.constant 0 : i32
    %c0_i32_3 = arith.constant 0 : i32
    return %arg0, %c0_i32, %c0_i32_0, %c0_i32_1, %c0_i32_2 : i32, i32, i32, i32, i32
  }
  func.func @transform_1(%arg0: i32) -> (i32, i32, i32) {
    %c0_i32 = arith.constant 0 : i32
    %c0_i32_0 = arith.constant 0 : i32
    %c0_i32_1 = arith.constant 0 : i32
    %c0_i32_2 = arith.constant 0 : i32
    return %c0_i32, %c0_i32_0, %c0_i32_1 : i32, i32, i32
  }
  func.func @transform_2(%arg0: i32) -> (i32, i32) {
    %c0_i32 = arith.constant 0 : i32
    %c0_i32_0 = arith.constant 0 : i32
    %c0_i32_1 = arith.constant 0 : i32
    return %c0_i32, %c0_i32_0 : i32, i32
  }
  func.func @transform_3(%arg0: i32) -> (i32, i32) {
    %c0_i32 = arith.constant 0 : i32
    %c0_i32_0 = arith.constant 0 : i32
    %c0_i32_1 = arith.constant 0 : i32
    return %c0_i32, %c0_i32_0 : i32, i32
  }
  func.func @transform_4(%arg0: i32) -> (i32, i32) {
    %c0_i32 = arith.constant 0 : i32
    %c0_i32_0 = arith.constant 0 : i32
    %c0_i32_1 = arith.constant 0 : i32
    return %c0_i32, %c0_i32_0 : i32, i32
  }
  func.func @transform_5(%arg0: i32) -> (i32, i32, i32) {
    %c0_i32 = arith.constant 0 : i32
    %c0_i32_0 = arith.constant 0 : i32
    %c0_i32_1 = arith.constant 0 : i32
    %c0_i32_2 = arith.constant 0 : i32
    return %c0_i32, %c0_i32_0, %c0_i32_1 : i32, i32, i32
  }
  func.func @transform_6(%arg0: i32) -> (i32, i32) {
    %c0_i32 = arith.constant 0 : i32
    %c0_i32_0 = arith.constant 0 : i32
    %c0_i32_1 = arith.constant 0 : i32
    return %c0_i32, %c0_i32_0 : i32, i32
  }
  func.func @transform_7(%arg0: i32) -> (i32, i32) {
    %c0_i32 = arith.constant 0 : i32
    %c0_i32_0 = arith.constant 0 : i32
    %c0_i32_1 = arith.constant 0 : i32
    return %c0_i32, %c0_i32_0 : i32, i32
  }
  func.func @transform_8(%arg0: i32) -> (i32, i32) {
    %c0_i32 = arith.constant 0 : i32
    %c0_i32_0 = arith.constant 0 : i32
    %c0_i32_1 = arith.constant 0 : i32
    return %c0_i32, %c0_i32_0 : i32, i32
  }
  func.func @transform_9(%arg0: i32) -> (i32, i32, i32) {
    %c0_i32 = arith.constant 0 : i32
    %c0_i32_0 = arith.constant 0 : i32
    %c0_i32_1 = arith.constant 0 : i32
    return %arg0, %c0_i32, %c0_i32_0 : i32, i32, i32
  }
}

module attributes {stable_mosaic.version = 11 : i64} {
  func.func @_fc_consensus_kernel(%arg0: i32, %arg1: memref<1x4x256xf32, #tpu.memory_space<vmem>>, %arg2: memref<256x128xbf16, #tpu.memory_space<vmem>>, %arg3: memref<1x128xf32, #tpu.memory_space<vmem>>, %arg4: memref<1x1x128xf32, #tpu.memory_space<vmem>>) attributes {dimension_semantics = [#tpu.dimension_semantics<parallel>], iteration_bounds = array<i64: 2>, scalar_prefetch = 0 : i64, scratch_operands = 0 : i64, tpu.core_type = #tpu.core_type<tc>, window_params = [{transform_indices = @transform_0, window_bounds = array<i64: 1, 4, 256>}, {pipeline_mode = #tpu.pipeline_mode<synchronous>, transform_indices = @transform_1, window_bounds = array<i64: 256, 128>}, {pipeline_mode = #tpu.pipeline_mode<synchronous>, transform_indices = @transform_2, window_bounds = array<i64: 1, 128>}, {transform_indices = @transform_3, window_bounds = array<i64: 1, 1, 128>}]} {
    %c0 = arith.constant 0 : index
    %c0_0 = arith.constant 0 : index
    %c0_1 = arith.constant 0 : index
    %0 = vector.load %arg1[%c0, %c0_0, %c0_1] : memref<1x4x256xf32, #tpu.memory_space<vmem>>, vector<1x4x256xf32>
    %1 = vector.shape_cast %0 : vector<1x4x256xf32> to vector<4x256xf32>
    %2 = arith.truncf %1 : vector<4x256xf32> to vector<4x256xbf16>
    %c0_2 = arith.constant 0 : index
    %c0_3 = arith.constant 0 : index
    %3 = vector.load %arg2[%c0_2, %c0_3] : memref<256x128xbf16, #tpu.memory_space<vmem>>, vector<256x128xbf16>
    %cst = arith.constant dense<0.000000e+00> : vector<4x128xf32>
    %4 = tpu.matmul %2, %3, %cst {dimension_numbers = #tpu.dot_dimension_numbers<[1], [0], [0], [1], [0, 0, 1, 1], [], []>} : vector<4x256xbf16>, vector<256x128xbf16>, vector<4x128xf32> -> vector<4x128xf32>
    %c0_4 = arith.constant 0 : index
    %c0_5 = arith.constant 0 : index
    %5 = vector.load %arg3[%c0_4, %c0_5] : memref<1x128xf32, #tpu.memory_space<vmem>>, vector<1x128xf32>
    %6 = vector.broadcast %5 : vector<1x128xf32> to vector<4x128xf32>
    %7 = arith.addf %4, %6 : vector<4x128xf32>
    %cst_6 = arith.constant dense<0.000000e+00> : vector<128xf32>
    %8 = vector.multi_reduction <add>, %7, %cst_6 [0] : vector<4x128xf32> to vector<128xf32>
    %9 = vector.shape_cast %8 : vector<128xf32> to vector<1x128xf32>
    %cst_7 = arith.constant 4.000000e+00 : f32
    %10 = vector.broadcast %cst_7 : f32 to vector<1x128xf32>
    %11 = arith.divf %9, %10 : vector<1x128xf32>
    %c0_8 = arith.constant 0 : index
    %c0_9 = arith.constant 0 : index
    %c0_10 = arith.constant 0 : index
    %12 = vector.load %arg4[%c0_8, %c0_9, %c0_10] : memref<1x1x128xf32, #tpu.memory_space<vmem>>, vector<1x1x128xf32>
    %13 = vector.shape_cast %12 : vector<1x1x128xf32> to vector<1x128xf32>
    %14 = vector.shape_cast %11 : vector<1x128xf32> to vector<1x1x128xf32>
    tpu.vector_store %arg4[%c0_8, %c0_9, %c0_10], %14 {strides = array<i32>} : memref<1x1x128xf32, #tpu.memory_space<vmem>>, vector<1x1x128xf32>,
    return
  }
  func.func @transform_0(%arg0: i32) -> (i32, i32, i32) {
    %c0_i32 = arith.constant 0 : i32
    %c0_i32_0 = arith.constant 0 : i32
    %c0_i32_1 = arith.constant 0 : i32
    return %arg0, %c0_i32, %c0_i32_0 : i32, i32, i32
  }
  func.func @transform_1(%arg0: i32) -> (i32, i32) {
    %c0_i32 = arith.constant 0 : i32
    %c0_i32_0 = arith.constant 0 : i32
    %c0_i32_1 = arith.constant 0 : i32
    return %c0_i32, %c0_i32_0 : i32, i32
  }
  func.func @transform_2(%arg0: i32) -> (i32, i32) {
    %c0_i32 = arith.constant 0 : i32
    %c0_i32_0 = arith.constant 0 : i32
    %c0_i32_1 = arith.constant 0 : i32
    return %c0_i32, %c0_i32_0 : i32, i32
  }
  func.func @transform_3(%arg0: i32) -> (i32, i32, i32) {
    %c0_i32 = arith.constant 0 : i32
    %c0_i32_0 = arith.constant 0 : i32
    %c0_i32_1 = arith.constant 0 : i32
    return %arg0, %c0_i32, %c0_i32_0 : i32, i32, i32
  }
}

</mosaic_0001>

<llo_original>
// kernel: tsn_middle3_forward.3
$region0: #{tsn_middle3_forward.3}
  #allocation0 [shape = 'u32[]', space=smem, size = 0x4, offset = 0x4, fixed_abs, tag = 'smem constant byte address 0x4 - core index']
  #allocation1 [shape = 'u32[144,128]{1,0:T(1,128)}', space=vmem, size = 0x12000, scoped, tag = 'internal scratch']
  %s0 = inlined_call_operand.vmem [shape: f32[2,4,256], index: 0, kind: input, shape index: {}]
  %s1 = inlined_call_operand.vmem [shape: bf16[256,128], index: 1, kind: input, shape index: {}]
  %s2 = inlined_call_operand.vmem [shape: f32[1,128], index: 2, kind: input, shape index: {}]
  %s3 = inlined_call_operand.hbm [shape: f32[2,1,128], index: 3, kind: output, shape index: {}]
  %s4 = sld [smem:[#allocation0]]
  $region45: #{tsn_middle3_forward.3} parent=0
    _
  %s6 = ssub.s32 1, %s4
  %s7 = scalar_select 0, %s6, %s4
  $region1: #{tsn_middle3_forward.3} parent=0
    #allocation2 [shape = 'u8[1024]{0}', space=vmem, size = 0x400, scoped, tag = 'output window, operand 0']
    #allocation3 [shape = 's32[2]{0}', space=sflag, size = 0x8, scoped, tag = 'scoped memory for tsn_middle3_forward.3']
    %8 = vsyncpa [#allocation3], 0
    %s9 = scalar_lea.sflag [#allocation3], 1
    %10 = vsyncpa %s9, 0
    loop: start=0, step=1, limit=4
    $region2: #{tsn_middle3_forward.3} parent=1 // loop_pre_header
      _
    $region3: #{tsn_middle3_forward.3} parent=1 // loop_header
      %s12 = sphi 0, %s16
      %p13 = scmp.ge.s32.totalorder %s12, 4
      %s22 = sphi 0, %s24
      %s25 = sphi 0, %s22
      %s26 = sphi 0, %s25
      %s42 = sphi 0, %s26
      %s46 = sphi 0, %s46
      %s48 = sphi 0, %s46
      %s49 = sphi 0, %s48
      %s63 = sphi 0, %s49
      %s67 = sphi 0, %s67
      %s69 = sphi 0, %s67
      %s70 = sphi 0, %s69
      %s84 = sphi 0, %s70
      %s90 = sphi 0, %s92
      %s93 = sphi 0, %s90
      %s94 = sphi 0, %s93
      %s110 = sphi 0, %s94
    $region4: #{tsn_middle3_forward.3} parent=1 // loop_header_branch
      %15 = sbr.rel (%p13) target = $region8
    $region5: #{tsn_middle3_forward.3} parent=1 // loop_body
      %s17 = ssub.s32 %s12, 1
      %s18 = ssub.s32 %s12, 2
      %s19 = sadd.s32 %s12, 1
      %s20 = ssub.s32 %s12, %s19
      %p21 = scmp.eq.s32.totalorder %s20, 0
      %s23 = sadd.s32 %s22, 1
      %s24 = scalar_select %p21, %s22, %s23
      %p27 = pneg %p21
      %p28 = scmp.eq.s32.totalorder %s12, 1
      %p29 = por %p27, %p28
      %p30 = scmp.ne.s32.totalorder %s22, %s25
      %p31 = scmp.eq.s32.totalorder %s12, 0
      %p32 = por %p30, %p31
      %p33 = scmp.ne.s32.totalorder %s22, %s25
      %p34 = scmp.eq.s32.totalorder %s17, 1
      %p35 = por %p33, %p34
      %p36 = scmp.ne.s32.totalorder %s25, %s26
      %p37 = scmp.eq.s32.totalorder %s17, 0
      %p38 = por %p36, %p37
      %p39 = scmp.ne.s32.totalorder %s25, %s26
      %p40 = scmp.eq.s32.totalorder %s18, 1
      %p41 = por %p39, %p40
      %p43 = scmp.ne.s32.totalorder %s26, %s42
      %p44 = scmp.eq.s32.totalorder %s18, 0
      %p45 = por %p43, %p44
      %s47 = sadd.s32 %s46, 1
      %p50 = scmp.eq.s32.totalorder %s12, 1
      %p51 = scmp.ne.s32.totalorder %s46, %s48
      %p52 = scmp.eq.s32.totalorder %s12, 0
      %p53 = por %p51, %p52
      %p54 = scmp.ne.s32.totalorder %s46, %s48
      %p55 = scmp.eq.s32.totalorder %s17, 1
      %p56 = por %p54, %p55
      %p57 = scmp.ne.s32.totalorder %s48, %s49
      %p58 = scmp.eq.s32.totalorder %s17, 0
      %p59 = por %p57, %p58
      %p60 = scmp.ne.s32.totalorder %s48, %s49
      %p61 = scmp.eq.s32.totalorder %s18, 1
      %p62 = por %p60, %p61
      %p64 = scmp.ne.s32.totalorder %s49, %s63
      %p65 = scmp.eq.s32.totalorder %s18, 0
      %p66 = por %p64, %p65
      %s68 = sadd.s32 %s67, 1
      %p71 = scmp.eq.s32.totalorder %s12, 1
      %p72 = scmp.ne.s32.totalorder %s67, %s69
      %p73 = scmp.eq.s32.totalorder %s12, 0
      %p74 = por %p72, %p73
      %p75 = scmp.ne.s32.totalorder %s67, %s69
      %p76 = scmp.eq.s32.totalorder %s17, 1
      %p77 = por %p75, %p76
      %p78 = scmp.ne.s32.totalorder %s69, %s70
      %p79 = scmp.eq.s32.totalorder %s17, 0
      %p80 = por %p78, %p79
      %p81 = scmp.ne.s32.totalorder %s69, %s70
      %p82 = scmp.eq.s32.totalorder %s18, 1
      %p83 = por %p81, %p82
      %p85 = scmp.ne.s32.totalorder %s70, %s84
      %p86 = scmp.eq.s32.totalorder %s18, 0
      %p87 = por %p85, %p86
      %s88 = ssub.s32 %s12, %s19
      %p89 = scmp.eq.s32.totalorder %s88, 0
      %s91 = sadd.s32 %s90, 1
      %s92 = scalar_select %p89, %s90, %s91
      %p95 = pneg %p89
      %p96 = scmp.eq.s32.totalorder %s12, 1
      %p97 = por %p95, %p96
      %p98 = scmp.ne.s32.totalorder %s90, %s93
      %p99 = scmp.eq.s32.totalorder %s12, 0
      %p100 = por %p98, %p99
      %p101 = scmp.ne.s32.totalorder %s90, %s93
      %p102 = scmp.eq.s32.totalorder %s17, 1
      %p103 = por %p101, %p102
      %p104 = scmp.ne.s32.totalorder %s93, %s94
      %p105 = scmp.eq.s32.totalorder %s17, 0
      %p106 = por %p104, %p105
      %p107 = scmp.ne.s32.totalorder %s93, %s94
      %p108 = scmp.eq.s32.totalorder %s18, 1
      %p109 = por %p107, %p108
      %p111 = scmp.ne.s32.totalorder %s94, %s110
      %p112 = scmp.eq.s32.totalorder %s18, 0
      %p113 = por %p111, %p112
      %p114 = scmp.le.s32.totalorder 1, %s12
      %p115 = scmp.lt.s32.totalorder %s12, 3
      %p116 = pnand %p114, %p115
      %p117 = pneg %p116
      // Predicated region
      $region9: #{tsn_middle3_forward.3} parent=5 // pred_check
        _
      $region10: #{tsn_middle3_forward.3} parent=5 // pred_check_branch
        %119 = sbr.rel (%p116) target = $region12
      $region11: #{tsn_middle3_forward.3} parent=5 // pred_region
        %s120 = ssub.s32 %s12, 1
        // Predicated region
        $region13: #{tsn_middle3_forward.3} parent=11 // pred_check
          %p121 = pneg %p59
        $region14: #{tsn_middle3_forward.3} parent=11 // pred_check_branch
          %123 = sbr.rel (%p121) target = $region16
        $region15: #{tsn_middle3_forward.3} parent=11 // pred_region
          _
        $region16: #{tsn_middle3_forward.3} parent=11 // pred_fallthru
          _
        // Predicated region
        $region17: #{tsn_middle3_forward.3} parent=11 // pred_check
          %p124 = pneg %p80
        $region18: #{tsn_middle3_forward.3} parent=11 // pred_check_branch
          %126 = sbr.rel (%p124) target = $region20
        $region19: #{tsn_middle3_forward.3} parent=11 // pred_region
          _
        $region20: #{tsn_middle3_forward.3} parent=11 // pred_fallthru
          _
      $region12: #{tsn_middle3_forward.3} parent=5 // pred_fallthru
        _
      %p127 = scmp.lt.s32.totalorder %s12, 2
      // Predicated region
      $region21: #{tsn_middle3_forward.3} parent=5 // pred_check
        %p128 = pneg %p127
      $region22: #{tsn_middle3_forward.3} parent=5 // pred_check_branch
        %130 = sbr.rel (%p128) target = $region24
      $region23: #{tsn_middle3_forward.3} parent=5 // pred_region
        // Predicated region
        $region25: #{tsn_middle3_forward.3} parent=23 // pred_check
          %p131 = pneg %p32
        $region26: #{tsn_middle3_forward.3} parent=23 // pred_check_branch
          %133 = sbr.rel (%p131) target = $region28
        $region27: #{tsn_middle3_forward.3} parent=23 // pred_region
          %p134 = scmp.lt.s32.totalorder %s12, 1
          %s135 = scalar_select %p134, %s12, 1
          %s136 = smul.addr %s135, 2
          %s137 = smul.addr %s136, 4
          %s138 = scalar_lea.vmem %s0, %s137
        $region28: #{tsn_middle3_forward.3} parent=23 // pred_fallthru
          _
      $region24: #{tsn_middle3_forward.3} parent=5 // pred_fallthru
        _
      %p139 = scmp.le.s32.totalorder 1, %s12
      %p140 = scmp.lt.s32.totalorder %s12, 3
      %p141 = pnand %p139, %p140
      %p142 = pneg %p141
      // Predicated region
      $region29: #{tsn_middle3_forward.3} parent=5 // pred_check
        _
      $region30: #{tsn_middle3_forward.3} parent=5 // pred_check_branch
        %144 = sbr.rel (%p141) target = $region32
      $region31: #{tsn_middle3_forward.3} parent=5 // pred_region
        %s145 = ssub.s32 %s12, 1
        %p146 = scmp.lt.s32.totalorder %s17, 1
        %s147 = scalar_select %p146, %s17, 1
        %s148 = smul.addr %s147, 2
        %s149 = smul.addr %s148, 4
        %s150 = scalar_lea.vmem %s0, %s149
        %p151 = pneg %p38
        %p152 = pneg %p35
        %p153 = pneg %p59
        %p154 = pneg %p56
        %p155 = pneg %p80
        %p156 = pneg %p77
        %p157 = pneg %p106
        %p158 = pneg %p103
        %s159 = sand.u32 %s93, 1
        %s160 = scalar_lea.sflag [#allocation3], %s159
        %s161 = sand.u32 %s93, 1
        %s162 = scalar_lea.vmem [#allocation2], %s161
        %p163 = scmp.lt.s32.totalorder %s17, 1
        %s164 = scalar_select %p163, %s17, 1
        %s165 = smul.addr %s164, 2
        %s166 = smul.addr %s165, 4
        %s167 = scalar_lea.vmem %s0, %s166
        %v169 = vld [vmem:[%s167] sm:$0xff]
        %v171 = vcombine.high %v169, %v169
        %v173 = vpack.c.bf16 %v169, %v169
        %v174 = vpack.c.bf16 %v171, %v171
        %v175 = vld [vmem:[%s1] sm:$0xf]
        %v176 = vld [vmem:[%s1 + $0x4] sm:$0xf]
        %v177 = vld [vmem:[%s1 + $0x8] sm:$0xf]
        %v178 = vld [vmem:[%s1 + $0xc] sm:$0xf]
        %v179 = vld [vmem:[%s1 + $0x10] sm:$0xf]
        %v180 = vld [vmem:[%s1 + $0x14] sm:$0xf]
        %v181 = vld [vmem:[%s1 + $0x18] sm:$0xf]
        %v182 = vld [vmem:[%s1 + $0x1c] sm:$0xf]
        %v183 = vld [vmem:[%s1 + $0x20] sm:$0xf]
        %v184 = vld [vmem:[%s1 + $0x24] sm:$0xf]
        %v185 = vld [vmem:[%s1 + $0x28] sm:$0xf]
        %v186 = vld [vmem:[%s1 + $0x2c] sm:$0xf]
        %v187 = vld [vmem:[%s1 + $0x30] sm:$0xf]
        %v188 = vld [vmem:[%s1 + $0x34] sm:$0xf]
        %v189 = vld [vmem:[%s1 + $0x38] sm:$0xf]
        %v190 = vld [vmem:[%s1 + $0x3c] sm:$0xf]
        %v191 = vld [vmem:[%s1 + $0x40] sm:$0xf]
        %v192 = vld [vmem:[%s1 + $0x44] sm:$0xf]
        %v193 = vld [vmem:[%s1 + $0x48] sm:$0xf]
        %v194 = vld [vmem:[%s1 + $0x4c] sm:$0xf]
        %v195 = vld [vmem:[%s1 + $0x50] sm:$0xf]
        %v196 = vld [vmem:[%s1 + $0x54] sm:$0xf]
        %v197 = vld [vmem:[%s1 + $0x58] sm:$0xf]
        %v198 = vld [vmem:[%s1 + $0x5c] sm:$0xf]
        %v199 = vld [vmem:[%s1 + $0x60] sm:$0xf]
        %v200 = vld [vmem:[%s1 + $0x64] sm:$0xf]
        %v201 = vld [vmem:[%s1 + $0x68] sm:$0xf]
        %v202 = vld [vmem:[%s1 + $0x6c] sm:$0xf]
        %v203 = vld [vmem:[%s1 + $0x70] sm:$0xf]
        %v204 = vld [vmem:[%s1 + $0x74] sm:$0xf]
        %v205 = vld [vmem:[%s1 + $0x78] sm:$0xf]
        %v206 = vld [vmem:[%s1 + $0x7c] sm:$0xf]
        %v207 = vld [vmem:[%s2] sm:$0x1]
        %v209 = vlaneseq
        %v210 = vshrl.u32 %v209, 7
        %v211 = vsub.s32 0, %v210
        %v212 = vrot.slane %v207, %v211
        %v246 = vunpack.c.l.b16 %v175
        %v247 = vunpack.c.l.b16 %v176
        %v248 = vunpack.c.l.b16 %v177
        %v249 = vunpack.c.l.b16 %v178
        %v250 = vunpack.c.l.b16 %v179
        %v251 = vunpack.c.l.b16 %v180
        %v252 = vunpack.c.l.b16 %v181
        %v253 = vunpack.c.l.b16 %v182
        %v254 = vunpack.c.l.b16 %v183
        %v255 = vunpack.c.l.b16 %v184
        %v256 = vunpack.c.l.b16 %v185
        %v257 = vunpack.c.l.b16 %v186
        %v258 = vunpack.c.l.b16 %v187
        %v259 = vunpack.c.l.b16 %v188
        %v260 = vunpack.c.l.b16 %v189
        %v261 = vunpack.c.l.b16 %v190
        %v262 = vunpack.c.l.b16 %v191
        %v263 = vunpack.c.l.b16 %v192
        %v264 = vunpack.c.l.b16 %v193
        %v265 = vunpack.c.l.b16 %v194
        %v266 = vunpack.c.l.b16 %v195
        %v267 = vunpack.c.l.b16 %v196
        %v268 = vunpack.c.l.b16 %v197
        %v269 = vunpack.c.l.b16 %v198
        %v270 = vunpack.c.l.b16 %v199
        %v271 = vunpack.c.l.b16 %v200
        %v272 = vunpack.c.l.b16 %v201
        %v273 = vunpack.c.l.b16 %v202
        %v274 = vunpack.c.l.b16 %v203
        %v275 = vunpack.c.l.b16 %v204
        %v276 = vunpack.c.l.b16 %v205
        %v277 = vunpack.c.l.b16 %v206
        %v278 = vpack.c.b16 %v247, %v246
        %v279 = vpack.c.b16 %v249, %v248
        %v280 = vpack.c.b16 %v251, %v250
        %v281 = vpack.c.b16 %v253, %v252
        %v282 = vpack.c.b16 %v255, %v254
        %v283 = vpack.c.b16 %v257, %v256
        %v284 = vpack.c.b16 %v259, %v258
        %v285 = vpack.c.b16 %v261, %v260
        %v286 = vpack.c.b16 %v263, %v262
        %v287 = vpack.c.b16 %v265, %v264
        %v288 = vpack.c.b16 %v267, %v266
        %v289 = vpack.c.b16 %v269, %v268
        %v290 = vpack.c.b16 %v271, %v270
        %v291 = vpack.c.b16 %v273, %v272
        %v292 = vpack.c.b16 %v275, %v274
        %v293 = vpack.c.b16 %v277, %v276
        %310 = vmatprep.subr.bf16.mxu0 0
        %311 = vmatpush1.bf16.msra.mxu0 %v278
        %312 = vmatprep.subr.bf16.mxu0 0
        %313 = vmatpush1.bf16.msra.mxu0 %v279
        %314 = vmatprep.subr.bf16.mxu0 0
        %315 = vmatpush1.bf16.msra.mxu0 %v280
        %316 = vmatprep.subr.bf16.mxu0 0
        %317 = vmatpush1.bf16.msra.mxu0 %v281
        %318 = vmatprep.subr.bf16.mxu0 0
        %319 = vmatpush1.bf16.msra.mxu0 %v282
        %320 = vmatprep.subr.bf16.mxu0 0
        %321 = vmatpush1.bf16.msra.mxu0 %v283
        %322 = vmatprep.subr.bf16.mxu0 0
        %323 = vmatpush1.bf16.msra.mxu0 %v284
        %324 = vmatprep.subr.bf16.mxu0 0
        %325 = vmatpush1.bf16.msra.mxu0 %v285
        %326 = vmatprep.subr.bf16.mxu0 0
        %327 = vmatpush1.bf16.msra.mxu0 %v286
        %328 = vmatprep.subr.bf16.mxu0 0
        %329 = vmatpush1.bf16.msra.mxu0 %v287
        %330 = vmatprep.subr.bf16.mxu0 0
        %331 = vmatpush1.bf16.msra.mxu0 %v288
        %332 = vmatprep.subr.bf16.mxu0 0
        %333 = vmatpush1.bf16.msra.mxu0 %v289
        %334 = vmatprep.subr.bf16.mxu0 0
        %335 = vmatpush1.bf16.msra.mxu0 %v290
        %336 = vmatprep.subr.bf16.mxu0 0
        %337 = vmatpush1.bf16.msra.mxu0 %v291
        %338 = vmatprep.subr.bf16.mxu0 0
        %339 = vmatpush1.bf16.msra.mxu0 %v292
        %340 = vmatprep.subr.bf16.mxu0 0
        %341 = vmatpush1.bf16.msra.mxu0 %v293
        %342 = vmatprep.mubr.bf16.mxu0 %v174
        %343 = vmatmul.mubr.bf16.gmra.mrb[0].mxu0 %v173
        %v344 = vpop.f32.mrb[0].mxu0
        %v345 = vadd.f32 %v212, %v344
        %v346 = vpop.f32.mrb[0].mxu0
        %v347 = vpop.f32.mrb[0].mxu0
        %v348 = vpop.f32.mrb[0].mxu0
        %349 = vdwg.mxu0
        %vm350 = vcmask 1043456
        %v351 = vsel %vm350, %v345, 0.0
        %v352 = vrot.slane %v351, 4
        %v353 = vadd.f32 %v351, %v352
        %v354 = vrot.slane %v353, 2
        %v355 = vadd.f32 %v353, %v354
        %v356 = vrot.slane %v355, 1
        %v357 = vadd.f32 %v355, %v356
        %v358 = vrcp.pop 4.0
        %v359 = vmul.f32 %v357, %v358
        %360 = vst [vmem:[%s162] sm:$0x1] %v359
        %s361 = sand.u32 %s93, 1
        %s362 = scalar_lea.sflag [#allocation3], %s361
        %s363 = sand.u32 %s93, 1
        %s364 = scalar_lea.vmem [#allocation2], %s363
        // Predicated region
        $region33: #{tsn_middle3_forward.3} parent=31 // pred_check
          %p365 = pneg %p103
        $region34: #{tsn_middle3_forward.3} parent=31 // pred_check_branch
          %367 = sbr.rel (%p365) target = $region36
        $region35: #{tsn_middle3_forward.3} parent=31 // pred_region
          %s369 = ssub.s32 16, 16
          %370 = vsyncadd %s362, %s369
          %s371 = smul.addr %s17, 16
          %s372 = scalar_lea.hbm %s3, %s371
          %s374 = sshll.u32 %s364, 4
          %s375 = int_to_ptr.vmem [resolvable:$true] %s374
          %377 = dma.vmem_to_hbm [thread:$0]  %s375, 16, %s372, %s362
        $region36: #{tsn_middle3_forward.3} parent=31 // pred_fallthru
          _
      $region32: #{tsn_middle3_forward.3} parent=5 // pred_fallthru
        _
      %p378 = scmp.le.s32.totalorder 2, %s12
      // Predicated region
      $region37: #{tsn_middle3_forward.3} parent=5 // pred_check
        %p379 = pneg %p378
      $region38: #{tsn_middle3_forward.3} parent=5 // pred_check_branch
        %381 = sbr.rel (%p379) target = $region40
      $region39: #{tsn_middle3_forward.3} parent=5 // pred_region
        %s382 = ssub.s32 %s12, 2
        // Predicated region
        $region41: #{tsn_middle3_forward.3} parent=39 // pred_check
          %p383 = pneg %p109
        $region42: #{tsn_middle3_forward.3} parent=39 // pred_check_branch
          %385 = sbr.rel (%p383) target = $region44
        $region43: #{tsn_middle3_forward.3} parent=39 // pred_region
          %s386 = sand.u32 %s94, 1
          %s387 = scalar_lea.sflag [#allocation3], %s386
          %s388 = sand.u32 %s94, 1
          %s389 = scalar_lea.vmem [#allocation2], %s388
          %390 = dma.done %s387, 16
        $region44: #{tsn_middle3_forward.3} parent=39 // pred_fallthru
          _
      $region40: #{tsn_middle3_forward.3} parent=5 // pred_fallthru
        _
    $region6: #{tsn_middle3_forward.3} parent=1 // loop_footer
      %s16 = sadd.s32 1, %s12
    $region7: #{tsn_middle3_forward.3} parent=1 // loop_footer_branch
      %11 = sbr.rel target = $region3
    $region8: #{tsn_middle3_forward.3} parent=1 // loop_exit
      _
    %391 = vsyncpa [#allocation3], 1
    %s392 = scalar_lea.sflag [#allocation3], 1
    %393 = vsyncpa %s392, 1

// kernel: tsn_middle3_forward.2
$region0: #{tsn_middle3_forward.2}
  #allocation0 [shape = 'u32[]', space=smem, size = 0x4, offset = 0x4, fixed_abs, tag = 'smem constant byte address 0x4 - core index']
  #allocation1 [shape = 'u32[144,128]{1,0:T(1,128)}', space=vmem, size = 0x12000, scoped, tag = 'internal scratch']
  #allocation2 [shape = 'f32[49,128]{1,0:T(8,128)}', space=vmem, size = 0x7000, scoped, tag = 'scratch operand']
  #allocation3 [shape = 'f32[9,9,128]{2,1,0:T(8,128)}', space=vmem, size = 0x12000, scoped, tag = 'scratch operand']
  %s0 = inlined_call_operand.vmem [shape: f32[8,4,8,8,128], index: 0, kind: input, shape index: {}]
  %s1 = inlined_call_operand.vmem [shape: f32[9,1,128], index: 1, kind: input, shape index: {}]
  %s2 = inlined_call_operand.vmem [shape: bf16[128,128], index: 2, kind: input, shape index: {}]
  %s3 = inlined_call_operand.vmem [shape: f32[1,128], index: 3, kind: input, shape index: {}]
  %s4 = inlined_call_operand.vmem [shape: f32[1,128], index: 4, kind: input, shape index: {}]
  %s5 = inlined_call_operand.vmem [shape: f32[9,1,128], index: 5, kind: input, shape index: {}]
  %s6 = inlined_call_operand.vmem [shape: bf16[128,256], index: 6, kind: input, shape index: {}]
  %s7 = inlined_call_operand.vmem [shape: f32[1,256], index: 7, kind: input, shape index: {}]
  %s8 = inlined_call_operand.vmem [shape: f32[1,256], index: 8, kind: input, shape index: {}]
  %s9 = inlined_call_operand.vmem [shape: f32[8,1,256], index: 9, kind: output, shape index: {}]
  %s10 = sld [smem:[#allocation0]]
  $region69: #{tsn_middle3_forward.2} parent=0
    _
  %s12 = ssub.s32 1, %s10
  %s13 = scalar_select 0, %s12, %s10
  loop: start=0, step=1, limit=10
  $region2: #{tsn_middle3_forward.2} parent=0 // loop_pre_header
    _
  $region3: #{tsn_middle3_forward.2} parent=0 // loop_header
    %s15 = sphi 0, %s19
    %p16 = scmp.ge.s32.totalorder %s15, 10
    %s25 = sphi 0, %s27
    %s28 = sphi 0, %s25
    %s29 = sphi 0, %s28
    %s45 = sphi 0, %s29
    %s49 = sphi 0, %s49
    %s51 = sphi 0, %s49
    %s52 = sphi 0, %s51
    %s66 = sphi 0, %s52
    %s70 = sphi 0, %s70
    %s72 = sphi 0, %s70
    %s73 = sphi 0, %s72
    %s87 = sphi 0, %s73
    %s91 = sphi 0, %s91
    %s93 = sphi 0, %s91
    %s94 = sphi 0, %s93
    %s108 = sphi 0, %s94
    %s112 = sphi 0, %s112
    %s114 = sphi 0, %s112
    %s115 = sphi 0, %s114
    %s129 = sphi 0, %s115
    %s133 = sphi 0, %s133
    %s135 = sphi 0, %s133
    %s136 = sphi 0, %s135
    %s150 = sphi 0, %s136
    %s154 = sphi 0, %s154
    %s156 = sphi 0, %s154
    %s157 = sphi 0, %s156
    %s171 = sphi 0, %s157
    %s175 = sphi 0, %s175
    %s177 = sphi 0, %s175
    %s178 = sphi 0, %s177
    %s192 = sphi 0, %s178
    %s196 = sphi 0, %s196
    %s198 = sphi 0, %s196
    %s199 = sphi 0, %s198
    %s213 = sphi 0, %s199
    %s219 = sphi 0, %s221
    %s222 = sphi 0, %s219
    %s223 = sphi 0, %s222
    %s239 = sphi 0, %s223
  $region4: #{tsn_middle3_forward.2} parent=0 // loop_header_branch
    %18 = sbr.rel (%p16) target = $region8
  $region5: #{tsn_middle3_forward.2} parent=0 // loop_body
    %s20 = ssub.s32 %s15, 1
    %s21 = ssub.s32 %s15, 2
    %s22 = sadd.s32 %s15, 1
    %s23 = ssub.s32 %s15, %s22
    %p24 = scmp.eq.s32.totalorder %s23, 0
    %s26 = sadd.s32 %s25, 1
    %s27 = scalar_select %p24, %s25, %s26
    %p30 = pneg %p24
    %p31 = scmp.eq.s32.totalorder %s15, 7
    %p32 = por %p30, %p31
    %p33 = scmp.ne.s32.totalorder %s25, %s28
    %p34 = scmp.eq.s32.totalorder %s15, 0
    %p35 = por %p33, %p34
    %p36 = scmp.ne.s32.totalorder %s25, %s28
    %p37 = scmp.eq.s32.totalorder %s20, 7
    %p38 = por %p36, %p37
    %p39 = scmp.ne.s32.totalorder %s28, %s29
    %p40 = scmp.eq.s32.totalorder %s20, 0
    %p41 = por %p39, %p40
    %p42 = scmp.ne.s32.totalorder %s28, %s29
    %p43 = scmp.eq.s32.totalorder %s21, 7
    %p44 = por %p42, %p43
    %p46 = scmp.ne.s32.totalorder %s29, %s45
    %p47 = scmp.eq.s32.totalorder %s21, 0
    %p48 = por %p46, %p47
    %s50 = sadd.s32 %s49, 1
    %p53 = scmp.eq.s32.totalorder %s15, 7
    %p54 = scmp.ne.s32.totalorder %s49, %s51
    %p55 = scmp.eq.s32.totalorder %s15, 0
    %p56 = por %p54, %p55
    %p57 = scmp.ne.s32.totalorder %s49, %s51
    %p58 = scmp.eq.s32.totalorder %s20, 7
    %p59 = por %p57, %p58
    %p60 = scmp.ne.s32.totalorder %s51, %s52
    %p61 = scmp.eq.s32.totalorder %s20, 0
    %p62 = por %p60, %p61
    %p63 = scmp.ne.s32.totalorder %s51, %s52
    %p64 = scmp.eq.s32.totalorder %s21, 7
    %p65 = por %p63, %p64
    %p67 = scmp.ne.s32.totalorder %s52, %s66
    %p68 = scmp.eq.s32.totalorder %s21, 0
    %p69 = por %p67, %p68
    %s71 = sadd.s32 %s70, 1
    %p74 = scmp.eq.s32.totalorder %s15, 7
    %p75 = scmp.ne.s32.totalorder %s70, %s72
    %p76 = scmp.eq.s32.totalorder %s15, 0
    %p77 = por %p75, %p76
    %p78 = scmp.ne.s32.totalorder %s70, %s72
    %p79 = scmp.eq.s32.totalorder %s20, 7
    %p80 = por %p78, %p79
    %p81 = scmp.ne.s32.totalorder %s72, %s73
    %p82 = scmp.eq.s32.totalorder %s20, 0
    %p83 = por %p81, %p82
    %p84 = scmp.ne.s32.totalorder %s72, %s73
    %p85 = scmp.eq.s32.totalorder %s21, 7
    %p86 = por %p84, %p85
    %p88 = scmp.ne.s32.totalorder %s73, %s87
    %p89 = scmp.eq.s32.totalorder %s21, 0
    %p90 = por %p88, %p89
    %s92 = sadd.s32 %s91, 1
    %p95 = scmp.eq.s32.totalorder %s15, 7
    %p96 = scmp.ne.s32.totalorder %s91, %s93
    %p97 = scmp.eq.s32.totalorder %s15, 0
    %p98 = por %p96, %p97
    %p99 = scmp.ne.s32.totalorder %s91, %s93
    %p100 = scmp.eq.s32.totalorder %s20, 7
    %p101 = por %p99, %p100
    %p102 = scmp.ne.s32.totalorder %s93, %s94
    %p103 = scmp.eq.s32.totalorder %s20, 0
    %p104 = por %p102, %p103
    %p105 = scmp.ne.s32.totalorder %s93, %s94
    %p106 = scmp.eq.s32.totalorder %s21, 7
    %p107 = por %p105, %p106
    %p109 = scmp.ne.s32.totalorder %s94, %s108
    %p110 = scmp.eq.s32.totalorder %s21, 0
    %p111 = por %p109, %p110
    %s113 = sadd.s32 %s112, 1
    %p116 = scmp.eq.s32.totalorder %s15, 7
    %p117 = scmp.ne.s32.totalorder %s112, %s114
    %p118 = scmp.eq.s32.totalorder %s15, 0
    %p119 = por %p117, %p118
    %p120 = scmp.ne.s32.totalorder %s112, %s114
    %p121 = scmp.eq.s32.totalorder %s20, 7
    %p122 = por %p120, %p121
    %p123 = scmp.ne.s32.totalorder %s114, %s115
    %p124 = scmp.eq.s32.totalorder %s20, 0
    %p125 = por %p123, %p124
    %p126 = scmp.ne.s32.totalorder %s114, %s115
    %p127 = scmp.eq.s32.totalorder %s21, 7
    %p128 = por %p126, %p127
    %p130 = scmp.ne.s32.totalorder %s115, %s129
    %p131 = scmp.eq.s32.totalorder %s21, 0
    %p132 = por %p130, %p131
    %s134 = sadd.s32 %s133, 1
    %p137 = scmp.eq.s32.totalorder %s15, 7
    %p138 = scmp.ne.s32.totalorder %s133, %s135
    %p139 = scmp.eq.s32.totalorder %s15, 0
    %p140 = por %p138, %p139
    %p141 = scmp.ne.s32.totalorder %s133, %s135
    %p142 = scmp.eq.s32.totalorder %s20, 7
    %p143 = por %p141, %p142
    %p144 = scmp.ne.s32.totalorder %s135, %s136
    %p145 = scmp.eq.s32.totalorder %s20, 0
    %p146 = por %p144, %p145
    %p147 = scmp.ne.s32.totalorder %s135, %s136
    %p148 = scmp.eq.s32.totalorder %s21, 7
    %p149 = por %p147, %p148
    %p151 = scmp.ne.s32.totalorder %s136, %s150
    %p152 = scmp.eq.s32.totalorder %s21, 0
    %p153 = por %p151, %p152
    %s155 = sadd.s32 %s154, 1
    %p158 = scmp.eq.s32.totalorder %s15, 7
    %p159 = scmp.ne.s32.totalorder %s154, %s156
    %p160 = scmp.eq.s32.totalorder %s15, 0
    %p161 = por %p159, %p160
    %p162 = scmp.ne.s32.totalorder %s154, %s156
    %p163 = scmp.eq.s32.totalorder %s20, 7
    %p164 = por %p162, %p163
    %p165 = scmp.ne.s32.totalorder %s156, %s157
    %p166 = scmp.eq.s32.totalorder %s20, 0
    %p167 = por %p165, %p166
    %p168 = scmp.ne.s32.totalorder %s156, %s157
    %p169 = scmp.eq.s32.totalorder %s21, 7
    %p170 = por %p168, %p169
    %p172 = scmp.ne.s32.totalorder %s157, %s171
    %p173 = scmp.eq.s32.totalorder %s21, 0
    %p174 = por %p172, %p173
    %s176 = sadd.s32 %s175, 1
    %p179 = scmp.eq.s32.totalorder %s15, 7
    %p180 = scmp.ne.s32.totalorder %s175, %s177
    %p181 = scmp.eq.s32.totalorder %s15, 0
    %p182 = por %p180, %p181
    %p183 = scmp.ne.s32.totalorder %s175, %s177
    %p184 = scmp.eq.s32.totalorder %s20, 7
    %p185 = por %p183, %p184
    %p186 = scmp.ne.s32.totalorder %s177, %s178
    %p187 = scmp.eq.s32.totalorder %s20, 0
    %p188 = por %p186, %p187
    %p189 = scmp.ne.s32.totalorder %s177, %s178
    %p190 = scmp.eq.s32.totalorder %s21, 7
    %p191 = por %p189, %p190
    %p193 = scmp.ne.s32.totalorder %s178, %s192
    %p194 = scmp.eq.s32.totalorder %s21, 0
    %p195 = por %p193, %p194
    %s197 = sadd.s32 %s196, 1
    %p200 = scmp.eq.s32.totalorder %s15, 7
    %p201 = scmp.ne.s32.totalorder %s196, %s198
    %p202 = scmp.eq.s32.totalorder %s15, 0
    %p203 = por %p201, %p202
    %p204 = scmp.ne.s32.totalorder %s196, %s198
    %p205 = scmp.eq.s32.totalorder %s20, 7
    %p206 = por %p204, %p205
    %p207 = scmp.ne.s32.totalorder %s198, %s199
    %p208 = scmp.eq.s32.totalorder %s20, 0
    %p209 = por %p207, %p208
    %p210 = scmp.ne.s32.totalorder %s198, %s199
    %p211 = scmp.eq.s32.totalorder %s21, 7
    %p212 = por %p210, %p211
    %p214 = scmp.ne.s32.totalorder %s199, %s213
    %p215 = scmp.eq.s32.totalorder %s21, 0
    %p216 = por %p214, %p215
    %s217 = ssub.s32 %s15, %s22
    %p218 = scmp.eq.s32.totalorder %s217, 0
    %s220 = sadd.s32 %s219, 1
    %s221 = scalar_select %p218, %s219, %s220
    %p224 = pneg %p218
    %p225 = scmp.eq.s32.totalorder %s15, 7
    %p226 = por %p224, %p225
    %p227 = scmp.ne.s32.totalorder %s219, %s222
    %p228 = scmp.eq.s32.totalorder %s15, 0
    %p229 = por %p227, %p228
    %p230 = scmp.ne.s32.totalorder %s219, %s222
    %p231 = scmp.eq.s32.totalorder %s20, 7
    %p232 = por %p230, %p231
    %p233 = scmp.ne.s32.totalorder %s222, %s223
    %p234 = scmp.eq.s32.totalorder %s20, 0
    %p235 = por %p233, %p234
    %p236 = scmp.ne.s32.totalorder %s222, %s223
    %p237 = scmp.eq.s32.totalorder %s21, 7
    %p238 = por %p236, %p237
    %p240 = scmp.ne.s32.totalorder %s223, %s239
    %p241 = scmp.eq.s32.totalorder %s21, 0
    %p242 = por %p240, %p241
    %p243 = scmp.le.s32.totalorder 1, %s15
    %p244 = scmp.lt.s32.totalorder %s15, 9
    %p245 = pnand %p243, %p244
    %p246 = pneg %p245
    // Predicated region
    $region9: #{tsn_middle3_forward.2} parent=5 // pred_check
      _
    $region10: #{tsn_middle3_forward.2} parent=5 // pred_check_branch
      %248 = sbr.rel (%p245) target = $region12
    $region11: #{tsn_middle3_forward.2} parent=5 // pred_region
      %s249 = ssub.s32 %s15, 1
      // Predicated region
      $region13: #{tsn_middle3_forward.2} parent=11 // pred_check
        %p250 = pneg %p62
      $region14: #{tsn_middle3_forward.2} parent=11 // pred_check_branch
        %252 = sbr.rel (%p250) target = $region16
      $region15: #{tsn_middle3_forward.2} parent=11 // pred_region
        _
      $region16: #{tsn_middle3_forward.2} parent=11 // pred_fallthru
        _
      // Predicated region
      $region17: #{tsn_middle3_forward.2} parent=11 // pred_check
        %p253 = pneg %p83
      $region18: #{tsn_middle3_forward.2} parent=11 // pred_check_branch
        %255 = sbr.rel (%p253) target = $region20
      $region19: #{tsn_middle3_forward.2} parent=11 // pred_region
        _
      $region20: #{tsn_middle3_forward.2} parent=11 // pred_fallthru
        _
      // Predicated region
      $region21: #{tsn_middle3_forward.2} parent=11 // pred_check
        %p256 = pneg %p104
      $region22: #{tsn_middle3_forward.2} parent=11 // pred_check_branch
        %258 = sbr.rel (%p256) target = $region24
      $region23: #{tsn_middle3_forward.2} parent=11 // pred_region
        _
      $region24: #{tsn_middle3_forward.2} parent=11 // pred_fallthru
        _
      // Predicated region
      $region25: #{tsn_middle3_forward.2} parent=11 // pred_check
        %p259 = pneg %p125
      $region26: #{tsn_middle3_forward.2} parent=11 // pred_check_branch
        %261 = sbr.rel (%p259) target = $region28
      $region27: #{tsn_middle3_forward.2} parent=11 // pred_region
        _
      $region28: #{tsn_middle3_forward.2} parent=11 // pred_fallthru
        _
      // Predicated region
      $region29: #{tsn_middle3_forward.2} parent=11 // pred_check
        %p262 = pneg %p146
      $region30: #{tsn_middle3_forward.2} parent=11 // pred_check_branch
        %264 = sbr.rel (%p262) target = $region32
      $region31: #{tsn_middle3_forward.2} parent=11 // pred_region
        _
      $region32: #{tsn_middle3_forward.2} parent=11 // pred_fallthru
        _
      // Predicated region
      $region33: #{tsn_middle3_forward.2} parent=11 // pred_check
        %p265 = pneg %p167
      $region34: #{tsn_middle3_forward.2} parent=11 // pred_check_branch
        %267 = sbr.rel (%p265) target = $region36
      $region35: #{tsn_middle3_forward.2} parent=11 // pred_region
        _
      $region36: #{tsn_middle3_forward.2} parent=11 // pred_fallthru
        _
      // Predicated region
      $region37: #{tsn_middle3_forward.2} parent=11 // pred_check
        %p268 = pneg %p188
      $region38: #{tsn_middle3_forward.2} parent=11 // pred_check_branch
        %270 = sbr.rel (%p268) target = $region40
      $region39: #{tsn_middle3_forward.2} parent=11 // pred_region
        _
      $region40: #{tsn_middle3_forward.2} parent=11 // pred_fallthru
        _
      // Predicated region
      $region41: #{tsn_middle3_forward.2} parent=11 // pred_check
        %p271 = pneg %p209
      $region42: #{tsn_middle3_forward.2} parent=11 // pred_check_branch
        %273 = sbr.rel (%p271) target = $region44
      $region43: #{tsn_middle3_forward.2} parent=11 // pred_region
        _
      $region44: #{tsn_middle3_forward.2} parent=11 // pred_fallthru
        _
    $region12: #{tsn_middle3_forward.2} parent=5 // pred_fallthru
      _
    %p274 = scmp.lt.s32.totalorder %s15, 8
    // Predicated region
    $region45: #{tsn_middle3_forward.2} parent=5 // pred_check
      %p275 = pneg %p274
    $region46: #{tsn_middle3_forward.2} parent=5 // pred_check_branch
      %277 = sbr.rel (%p275) target = $region48
    $region47: #{tsn_middle3_forward.2} parent=5 // pred_region
      // Predicated region
      $region49: #{tsn_middle3_forward.2} parent=47 // pred_check
        %p278 = pneg %p35
      $region50: #{tsn_middle3_forward.2} parent=47 // pred_check_branch
        %280 = sbr.rel (%p278) target = $region52
      $region51: #{tsn_middle3_forward.2} parent=47 // pred_region
        %p281 = scmp.lt.s32.totalorder %s15, 7
        %s282 = scalar_select %p281, %s15, 7
        %s283 = smul.addr %s282, 32
        %s284 = smul.addr %s283, 8
        %s285 = scalar_lea.vmem %s0, %s284
      $region52: #{tsn_middle3_forward.2} parent=47 // pred_fallthru
        _
    $region48: #{tsn_middle3_forward.2} parent=5 // pred_fallthru
      _
    %p286 = scmp.le.s32.totalorder 1, %s15
    %p287 = scmp.lt.s32.totalorder %s15, 9
    %p288 = pnand %p286, %p287
    %p289 = pneg %p288
    // Predicated region
    $region53: #{tsn_middle3_forward.2} parent=5 // pred_check
      _
    $region54: #{tsn_middle3_forward.2} parent=5 // pred_check_branch
      %291 = sbr.rel (%p288) target = $region56
    $region55: #{tsn_middle3_forward.2} parent=5 // pred_region
      %s292 = ssub.s32 %s15, 1
      %p293 = scmp.lt.s32.totalorder %s20, 7
      %s294 = scalar_select %p293, %s20, 7
      %s295 = smul.addr %s294, 32
      %s296 = smul.addr %s295, 8
      %s297 = scalar_lea.vmem %s0, %s296
      %p298 = pneg %p41
      %p299 = pneg %p38
      %p300 = pneg %p62
      %p301 = pneg %p59
      %p302 = pneg %p83
      %p303 = pneg %p80
      %p304 = pneg %p104
      %p305 = pneg %p101
      %p306 = pneg %p125
      %p307 = pneg %p122
      %p308 = pneg %p146
      %p309 = pneg %p143
      %p310 = pneg %p167
      %p311 = pneg %p164
      %p312 = pneg %p188
      %p313 = pneg %p185
      %p314 = pneg %p209
      %p315 = pneg %p206
      %p316 = pneg %p235
      %p317 = pneg %p232
      %p318 = scmp.lt.s32.totalorder %s20, 7
      %s319 = scalar_select %p318, %s20, 7
      %s320 = smul.addr %s319, 2
      %s321 = scalar_lea.vmem %s9, %s320
      %p322 = scmp.lt.s32.totalorder %s20, 7
      %s323 = scalar_select %p322, %s20, 7
      %s324 = smul.addr %s323, 32
      %s325 = smul.addr %s324, 8
      %s326 = scalar_lea.vmem %s0, %s325
      %p327 = scmp.lt.s32.totalorder %s20, 7
      %s328 = scalar_select %p327, %s20, 7
      %s329 = smul.addr %s328, 2
      %s330 = scalar_lea.vmem %s9, %s329
      %v332 = vld [vmem:[%s1] sm:$0x1]
      %v333 = vld [vmem:[%s1 + $0x1] sm:$0x1]
      %v334 = vld [vmem:[%s1 + $0x2] sm:$0x1]
      %v335 = vld [vmem:[%s1 + $0x3] sm:$0x1]
      %v336 = vld [vmem:[%s1 + $0x4] sm:$0x1]
      %v337 = vld [vmem:[%s1 + $0x5] sm:$0x1]
      %v338 = vld [vmem:[%s1 + $0x6] sm:$0x1]
      %v339 = vld [vmem:[%s1 + $0x7] sm:$0x1]
      %v340 = vld [vmem:[%s1 + $0x8] sm:$0x1]
      %v341 = vld [vmem:[%s326] sm:$0x7f]
      %v342 = vld [vmem:[%s326 + $0x8] sm:$0x7f]
      %v343 = vld [vmem:[%s326 + $0x10] sm:$0x7f]
      %v344 = vld [vmem:[%s326 + $0x18] sm:$0x7f]
      %v345 = vld [vmem:[%s326 + $0x20] sm:$0x7f]
      %v346 = vld [vmem:[%s326 + $0x28] sm:$0x7f]
      %v347 = vld [vmem:[%s326 + $0x30] sm:$0x7f]
      %v349 = vlaneseq
      %v350 = vshrl.u32 %v349, 7
      %v351 = vsub.s32 0, %v350
      %v352 = vrot.slane %v332, %v351
      %v354 = vmul.f32 %v341, %v352
      %v355 = vmul.f32 %v342, %v352
      %v356 = vmul.f32 %v343, %v352
      %v357 = vmul.f32 %v344, %v352
      %v358 = vmul.f32 %v345, %v352
      %v359 = vmul.f32 %v346, %v352
      %v360 = vmul.f32 %v347, %v352
      %s361 = scalar_lea.vmem %s326, 64
      %v362 = vld [vmem:[%s361] sm:$0x7f]
      %v363 = vld [vmem:[%s361 + $0x8] sm:$0x7f]
      %v364 = vld [vmem:[%s361 + $0x10] sm:$0x7f]
      %v365 = vld [vmem:[%s361 + $0x18] sm:$0x7f]
      %v366 = vld [vmem:[%s361 + $0x20] sm:$0x7f]
      %v367 = vld [vmem:[%s361 + $0x28] sm:$0x7f]
      %v368 = vld [vmem:[%s361 + $0x30] sm:$0x7f]
      %v370 = vlaneseq
      %v371 = vshrl.u32 %v370, 7
      %v372 = vsub.s32 0, %v371
      %v373 = vrot.slane %v333, %v372
      %v375 = vmul.f32 %v362, %v373
      %v376 = vmul.f32 %v363, %v373
      %v377 = vmul.f32 %v364, %v373
      %v378 = vmul.f32 %v365, %v373
      %v379 = vmul.f32 %v366, %v373
      %v380 = vmul.f32 %v367, %v373
      %v381 = vmul.f32 %v368, %v373
      %v382 = vadd.f32 %v354, %v375
      %v383 = vadd.f32 %v355, %v376
      %v384 = vadd.f32 %v356, %v377
      %v385 = vadd.f32 %v357, %v378
      %v386 = vadd.f32 %v358, %v379
      %v387 = vadd.f32 %v359, %v380
      %v388 = vadd.f32 %v360, %v381
      %v389 = vld [vmem:[%s326 + $0x1] sm:$0x7f]
      %v390 = vld [vmem:[%s326 + $0x9] sm:$0x7f]
      %v391 = vld [vmem:[%s326 + $0x11] sm:$0x7f]
      %v392 = vld [vmem:[%s326 + $0x19] sm:$0x7f]
      %v393 = vld [vmem:[%s326 + $0x21] sm:$0x7f]
      %v394 = vld [vmem:[%s326 + $0x29] sm:$0x7f]
      %v395 = vld [vmem:[%s326 + $0x31] sm:$0x7f]
      %v397 = vlaneseq
      %v398 = vshrl.u32 %v397, 7
      %v399 = vsub.s32 0, %v398
      %v400 = vrot.slane %v334, %v399
      %v402 = vmul.f32 %v389, %v400
      %v403 = vmul.f32 %v390, %v400
      %v404 = vmul.f32 %v391, %v400
      %v405 = vmul.f32 %v392, %v400
      %v406 = vmul.f32 %v393, %v400
      %v407 = vmul.f32 %v394, %v400
      %v408 = vmul.f32 %v395, %v400
      %v409 = vadd.f32 %v382, %v402
      %v410 = vadd.f32 %v383, %v403
      %v411 = vadd.f32 %v384, %v404
      %v412 = vadd.f32 %v385, %v405
      %v413 = vadd.f32 %v386, %v406
      %v414 = vadd.f32 %v387, %v407
      %v415 = vadd.f32 %v388, %v408
      %s416 = scalar_lea.vmem %s326, 128
      %v417 = vld [vmem:[%s416] sm:$0x7f]
      %v418 = vld [vmem:[%s416 + $0x8] sm:$0x7f]
      %v419 = vld [vmem:[%s416 + $0x10] sm:$0x7f]
      %v420 = vld [vmem:[%s416 + $0x18] sm:$0x7f]
      %v421 = vld [vmem:[%s416 + $0x20] sm:$0x7f]
      %v422 = vld [vmem:[%s416 + $0x28] sm:$0x7f]
      %v423 = vld [vmem:[%s416 + $0x30] sm:$0x7f]
      %v425 = vlaneseq
      %v426 = vshrl.u32 %v425, 7
      %v427 = vsub.s32 0, %v426
      %v428 = vrot.slane %v335, %v427
      %v430 = vmul.f32 %v417, %v428
      %v431 = vmul.f32 %v418, %v428
      %v432 = vmul.f32 %v419, %v428
      %v433 = vmul.f32 %v420, %v428
      %v434 = vmul.f32 %v421, %v428
      %v435 = vmul.f32 %v422, %v428
      %v436 = vmul.f32 %v423, %v428
      %v437 = vadd.f32 %v409, %v430
      %v438 = vadd.f32 %v410, %v431
      %v439 = vadd.f32 %v411, %v432
      %v440 = vadd.f32 %v412, %v433
      %v441 = vadd.f32 %v413, %v434
      %v442 = vadd.f32 %v414, %v435
      %v443 = vadd.f32 %v415, %v436
      %s444 = scalar_lea.vmem %s326, 192
      %v445 = vld [vmem:[%s444] sm:$0x7f]
      %v446 = vld [vmem:[%s444 + $0x8] sm:$0x7f]
      %v447 = vld [vmem:[%s444 + $0x10] sm:$0x7f]
      %v448 = vld [vmem:[%s444 + $0x18] sm:$0x7f]
      %v449 = vld [vmem:[%s444 + $0x20] sm:$0x7f]
      %v450 = vld [vmem:[%s444 + $0x28] sm:$0x7f]
      %v451 = vld [vmem:[%s444 + $0x30] sm:$0x7f]
      %v453 = vlaneseq
      %v454 = vshrl.u32 %v453, 7
      %v455 = vsub.s32 0, %v454
      %v456 = vrot.slane %v336, %v455
      %v458 = vmul.f32 %v445, %v456
      %v459 = vmul.f32 %v446, %v456
      %v460 = vmul.f32 %v447, %v456
      %v461 = vmul.f32 %v448, %v456
      %v462 = vmul.f32 %v449, %v456
      %v463 = vmul.f32 %v450, %v456
      %v464 = vmul.f32 %v451, %v456
      %v465 = vadd.f32 %v437, %v458
      %v466 = vadd.f32 %v438, %v459
      %v467 = vadd.f32 %v439, %v460
      %v468 = vadd.f32 %v440, %v461
      %v469 = vadd.f32 %v441, %v462
      %v470 = vadd.f32 %v442, %v463
      %v471 = vadd.f32 %v443, %v464
      %v472 = vld [vmem:[%s416 + $0x1] sm:$0x7f]
      %v473 = vld [vmem:[%s416 + $0x9] sm:$0x7f]
      %v474 = vld [vmem:[%s416 + $0x11] sm:$0x7f]
      %v475 = vld [vmem:[%s416 + $0x19] sm:$0x7f]
      %v476 = vld [vmem:[%s416 + $0x21] sm:$0x7f]
      %v477 = vld [vmem:[%s416 + $0x29] sm:$0x7f]
      %v478 = vld [vmem:[%s416 + $0x31] sm:$0x7f]
      %v480 = vlaneseq
      %v481 = vshrl.u32 %v480, 7
      %v482 = vsub.s32 0, %v481
      %v483 = vrot.slane %v337, %v482
      %v485 = vmul.f32 %v472, %v483
      %v486 = vmul.f32 %v473, %v483
      %v487 = vmul.f32 %v474, %v483
      %v488 = vmul.f32 %v475, %v483
      %v489 = vmul.f32 %v476, %v483
      %v490 = vmul.f32 %v477, %v483
      %v491 = vmul.f32 %v478, %v483
      %v492 = vadd.f32 %v465, %v485
      %v493 = vadd.f32 %v466, %v486
      %v494 = vadd.f32 %v467, %v487
      %v495 = vadd.f32 %v468, %v488
      %v496 = vadd.f32 %v469, %v489
      %v497 = vadd.f32 %v470, %v490
      %v498 = vadd.f32 %v471, %v491
      %s499 = scalar_lea.vmem %s326, 8
      %v500 = vld [vmem:[%s499] sm:$0x7f]
      %v501 = vld [vmem:[%s499 + $0x8] sm:$0x7f]
      %v502 = vld [vmem:[%s499 + $0x10] sm:$0x7f]
      %v503 = vld [vmem:[%s499 + $0x18] sm:$0x7f]
      %v504 = vld [vmem:[%s499 + $0x20] sm:$0x7f]
      %v505 = vld [vmem:[%s499 + $0x28] sm:$0x7f]
      %v506 = vld [vmem:[%s499 + $0x30] sm:$0x7f]
      %v508 = vlaneseq
      %v509 = vshrl.u32 %v508, 7
      %v510 = vsub.s32 0, %v509
      %v511 = vrot.slane %v338, %v510
      %v513 = vmul.f32 %v500, %v511
      %v514 = vmul.f32 %v501, %v511
      %v515 = vmul.f32 %v502, %v511
      %v516 = vmul.f32 %v503, %v511
      %v517 = vmul.f32 %v504, %v511
      %v518 = vmul.f32 %v505, %v511
      %v519 = vmul.f32 %v506, %v511
      %v520 = vadd.f32 %v492, %v513
      %v521 = vadd.f32 %v493, %v514
      %v522 = vadd.f32 %v494, %v515
      %v523 = vadd.f32 %v495, %v516
      %v524 = vadd.f32 %v496, %v517
      %v525 = vadd.f32 %v497, %v518
      %v526 = vadd.f32 %v498, %v519
      %s527 = scalar_lea.vmem %s326, 72
      %v528 = vld [vmem:[%s527] sm:$0x7f]
      %v529 = vld [vmem:[%s527 + $0x8] sm:$0x7f]
      %v530 = vld [vmem:[%s527 + $0x10] sm:$0x7f]
      %v531 = vld [vmem:[%s527 + $0x18] sm:$0x7f]
      %v532 = vld [vmem:[%s527 + $0x20] sm:$0x7f]
      %v533 = vld [vmem:[%s527 + $0x28] sm:$0x7f]
      %v534 = vld [vmem:[%s527 + $0x30] sm:$0x7f]
      %v536 = vlaneseq
      %v537 = vshrl.u32 %v536, 7
      %v538 = vsub.s32 0, %v537
      %v539 = vrot.slane %v339, %v538
      %v541 = vmul.f32 %v528, %v539
      %v542 = vmul.f32 %v529, %v539
      %v543 = vmul.f32 %v530, %v539
      %v544 = vmul.f32 %v531, %v539
      %v545 = vmul.f32 %v532, %v539
      %v546 = vmul.f32 %v533, %v539
      %v547 = vmul.f32 %v534, %v539
      %v548 = vadd.f32 %v520, %v541
      %v549 = vadd.f32 %v521, %v542
      %v550 = vadd.f32 %v522, %v543
      %v551 = vadd.f32 %v523, %v544
      %v552 = vadd.f32 %v524, %v545
      %v553 = vadd.f32 %v525, %v546
      %v554 = vadd.f32 %v526, %v547
      %v555 = vld [vmem:[%s499 + $0x1] sm:$0x7f]
      %v556 = vld [vmem:[%s499 + $0x9] sm:$0x7f]
      %v557 = vld [vmem:[%s499 + $0x11] sm:$0x7f]
      %v558 = vld [vmem:[%s499 + $0x19] sm:$0x7f]
      %v559 = vld [vmem:[%s499 + $0x21] sm:$0x7f]
      %v560 = vld [vmem:[%s499 + $0x29] sm:$0x7f]
      %v561 = vld [vmem:[%s499 + $0x31] sm:$0x7f]
      %v563 = vlaneseq
      %v564 = vshrl.u32 %v563, 7
      %v565 = vsub.s32 0, %v564
      %v566 = vrot.slane %v340, %v565
      %v568 = vmul.f32 %v555, %v566
      %v569 = vmul.f32 %v556, %v566
      %v570 = vmul.f32 %v557, %v566
      %v571 = vmul.f32 %v558, %v566
      %v572 = vmul.f32 %v559, %v566
      %v573 = vmul.f32 %v560, %v566
      %v574 = vmul.f32 %v561, %v566
      %v575 = vadd.f32 %v548, %v568
      %v576 = vadd.f32 %v549, %v569
      %v577 = vadd.f32 %v550, %v570
      %v578 = vadd.f32 %v551, %v571
      %v579 = vadd.f32 %v552, %v572
      %v580 = vadd.f32 %v553, %v573
      %v581 = vadd.f32 %v554, %v574
      %582 = vst [vmem:[#allocation2] sm:$0x7f] %v575
      %583 = vst [vmem:[#allocation2 + $0x7] sm:$0x7f] %v576
      %584 = vst [vmem:[#allocation2 + $0xe] sm:$0x7f] %v577
      %585 = vst [vmem:[#allocation2 + $0x15] sm:$0x7f] %v578
      %586 = vst [vmem:[#allocation2 + $0x1c] sm:$0x7f] %v579
      %587 = vst [vmem:[#allocation2 + $0x23] sm:$0x7f] %v580
      %588 = vst [vmem:[#allocation2 + $0x2a] sm:$0x7f] %v581
      %v589 = vld [vmem:[#allocation2] sm:$0xff]
      %v590 = vld [vmem:[#allocation2 + $0x8] sm:$0xff]
      %v591 = vld [vmem:[#allocation2 + $0x10] sm:$0xff]
      %v592 = vld [vmem:[#allocation2 + $0x18] sm:$0xff]
      %v593 = vld [vmem:[#allocation2 + $0x20] sm:$0xff]
      %v594 = vld [vmem:[#allocation2 + $0x28] sm:$0xff]
      %v595 = vld [vmem:[#allocation2 + $0x30] sm:$0x1]
      %v596 = vpack.c.bf16 %v590, %v589
      %v597 = vpack.c.bf16 %v592, %v591
      %v598 = vpack.c.bf16 %v594, %v593
      %v599 = vpack.c.bf16 %v595, %v595
      %v600 = vld [vmem:[%s2] sm:$0xf]
      %v601 = vld [vmem:[%s2 + $0x4] sm:$0xf]
      %v602 = vld [vmem:[%s2 + $0x8] sm:$0xf]
      %v603 = vld [vmem:[%s2 + $0xc] sm:$0xf]
      %v604 = vld [vmem:[%s2 + $0x10] sm:$0xf]
      %v605 = vld [vmem:[%s2 + $0x14] sm:$0xf]
      %v606 = vld [vmem:[%s2 + $0x18] sm:$0xf]
      %v607 = vld [vmem:[%s2 + $0x1c] sm:$0xf]
      %v608 = vld [vmem:[%s2 + $0x20] sm:$0xf]
      %v609 = vld [vmem:[%s2 + $0x24] sm:$0xf]
      %v610 = vld [vmem:[%s2 + $0x28] sm:$0xf]
      %v611 = vld [vmem:[%s2 + $0x2c] sm:$0xf]
      %v612 = vld [vmem:[%s2 + $0x30] sm:$0xf]
      %v613 = vld [vmem:[%s2 + $0x34] sm:$0xf]
      %v614 = vld [vmem:[%s2 + $0x38] sm:$0xf]
      %v615 = vld [vmem:[%s2 + $0x3c] sm:$0xf]
      %v632 = vunpack.c.l.b16 %v600
      %v633 = vunpack.c.l.b16 %v601
      %v634 = vunpack.c.l.b16 %v602
      %v635 = vunpack.c.l.b16 %v603
      %v636 = vunpack.c.l.b16 %v604
      %v637 = vunpack.c.l.b16 %v605
      %v638 = vunpack.c.l.b16 %v606
      %v639 = vunpack.c.l.b16 %v607
      %v640 = vunpack.c.l.b16 %v608
      %v641 = vunpack.c.l.b16 %v609
      %v642 = vunpack.c.l.b16 %v610
      %v643 = vunpack.c.l.b16 %v611
      %v644 = vunpack.c.l.b16 %v612
      %v645 = vunpack.c.l.b16 %v613
      %v646 = vunpack.c.l.b16 %v614
      %v647 = vunpack.c.l.b16 %v615
      %v648 = vpack.c.b16 %v633, %v632
      %v649 = vpack.c.b16 %v635, %v634
      %v650 = vpack.c.b16 %v637, %v636
      %v651 = vpack.c.b16 %v639, %v638
      %v652 = vpack.c.b16 %v641, %v640
      %v653 = vpack.c.b16 %v643, %v642
      %v654 = vpack.c.b16 %v645, %v644
      %v655 = vpack.c.b16 %v647, %v646
      %664 = vmatprep.subr.bf16.mxu0 0
      %665 = vmatpush1.bf16.msra.mxu0 %v648
      %666 = vmatprep.subr.bf16.mxu0 0
      %667 = vmatpush1.bf16.msra.mxu0 %v649
      %668 = vmatprep.subr.bf16.mxu0 0
      %669 = vmatpush1.bf16.msra.mxu0 %v650
      %670 = vmatprep.subr.bf16.mxu0 0
      %671 = vmatpush1.bf16.msra.mxu0 %v651
      %672 = vmatprep.subr.bf16.mxu0 0
      %673 = vmatpush1.bf16.msra.mxu0 %v652
      %674 = vmatprep.subr.bf16.mxu0 0
      %675 = vmatpush1.bf16.msra.mxu0 %v653
      %676 = vmatprep.subr.bf16.mxu0 0
      %677 = vmatpush1.bf16.msra.mxu0 %v654
      %678 = vmatprep.subr.bf16.mxu0 0
      %679 = vmatpush1.bf16.msra.mxu0 %v655
      %680 = vmatprep.subr.bf16.mxu0 0
      %681 = vmatpush1.bf16.msra.mxu0 0
      %682 = vmatprep.subr.bf16.mxu0 0
      %683 = vmatpush1.bf16.msra.mxu0 0
      %684 = vmatprep.subr.bf16.mxu0 0
      %685 = vmatpush1.bf16.msra.mxu0 0
      %686 = vmatprep.subr.bf16.mxu0 0
      %687 = vmatpush1.bf16.msra.mxu0 0
      %688 = vmatprep.subr.bf16.mxu0 0
      %689 = vmatpush1.bf16.msra.mxu0 0
      %690 = vmatprep.subr.bf16.mxu0 0
      %691 = vmatpush1.bf16.msra.mxu0 0
      %692 = vmatprep.subr.bf16.mxu0 0
      %693 = vmatpush1.bf16.msra.mxu0 0
      %694 = vmatprep.subr.bf16.mxu0 0
      %695 = vmatpush1.bf16.msra.mxu0 0
      %696 = vmatprep.mubr.bf16.mxu0 0
      %697 = vmatmul.mubr.bf16.gmra.mrb[0].mxu0 %v596
      %v698 = vpop.f32.mrb[0].mxu0
      %v699 = vadd.f32 0.0, %v698
      %v700 = vpop.f32.mrb[0].mxu0
      %v701 = vpop.f32.mrb[0].mxu0
      %v702 = vadd.f32 0.0, %v701
      %v703 = vpop.f32.mrb[0].mxu0
      %704 = vmatprep.mubr.bf16.mxu0 0
      %705 = vmatmul.mubr.bf16.gmra.mrb[0].mxu0 %v597
      %v706 = vpop.f32.mrb[0].mxu0
      %v707 = vadd.f32 0.0, %v706
      %v708 = vpop.f32.mrb[0].mxu0
      %v709 = vpop.f32.mrb[0].mxu0
      %v710 = vadd.f32 0.0, %v709
      %v711 = vpop.f32.mrb[0].mxu0
      %712 = vmatprep.mubr.bf16.mxu0 0
      %713 = vmatmul.mubr.bf16.gmra.mrb[0].mxu0 %v598
      %v714 = vpop.f32.mrb[0].mxu0
      %v715 = vadd.f32 0.0, %v714
      %v716 = vpop.f32.mrb[0].mxu0
      %v717 = vpop.f32.mrb[0].mxu0
      %v718 = vadd.f32 0.0, %v717
      %v719 = vpop.f32.mrb[0].mxu0
      %720 = vmatprep.mubr.bf16.mxu0 0
      %721 = vmatmul.mubr.bf16.gmra.mrb[0].mxu0 %v599
      %v722 = vpop.f32.mrb[0].mxu0
      %v723 = vadd.f32 0.0, %v722
      %v724 = vpop.f32.mrb[0].mxu0
      %v725 = vpop.f32.mrb[0].mxu0
      %v726 = vpop.f32.mrb[0].mxu0
      %727 = vdwg.mxu0
      %v728 = vld [vmem:[%s3] sm:$0x1]
      %v730 = vlaneseq
      %v731 = vshrl.u32 %v730, 7
      %v732 = vsub.s32 0, %v731
      %v733 = vrot.slane %v728, %v732
      %v735 = vmul.f32 %v699, %v733
      %v736 = vmul.f32 %v702, %v733
      %v737 = vmul.f32 %v707, %v733
      %v738 = vmul.f32 %v710, %v733
      %v739 = vmul.f32 %v715, %v733
      %v740 = vmul.f32 %v718, %v733
      %v741 = vmul.f32 %v723, %v733
      %v742 = vld [vmem:[%s4] sm:$0x1]
      %v744 = vlaneseq
      %v745 = vshrl.u32 %v744, 7
      %v746 = vsub.s32 0, %v745
      %v747 = vrot.slane %v742, %v746
      %v749 = vadd.f32 %v735, %v747
      %v750 = vadd.f32 %v736, %v747
      %v751 = vadd.f32 %v737, %v747
      %v752 = vadd.f32 %v738, %v747
      %v753 = vadd.f32 %v739, %v747
      %v754 = vadd.f32 %v740, %v747
      %v755 = vadd.f32 %v741, %v747
      %v756 = vmax.f32 %v749, 0.0
      %v757 = vmax.f32 %v750, 0.0
      %v758 = vmax.f32 %v751, 0.0
      %v759 = vmax.f32 %v752, 0.0
      %v760 = vmax.f32 %v753, 0.0
      %v761 = vmax.f32 %v754, 0.0
      %v762 = vmax.f32 %v755, 0.0
      %763 = vst [vmem:[#allocation3] sm:$0xff] 0.0
      %764 = vst [vmem:[#allocation3 + $0x8] sm:$0x1] 0.0
      %765 = vst [vmem:[#allocation3 + $0x10] sm:$0xff] 0.0
      %766 = vst [vmem:[#allocation3 + $0x18] sm:$0x1] 0.0
      %767 = vst [vmem:[#allocation3 + $0x20] sm:$0xff] 0.0
      %768 = vst [vmem:[#allocation3 + $0x28] sm:$0x1] 0.0
      %769 = vst [vmem:[#allocation3 + $0x30] sm:$0xff] 0.0
      %770 = vst [vmem:[#allocation3 + $0x38] sm:$0x1] 0.0
      %771 = vst [vmem:[#allocation3 + $0x40] sm:$0xff] 0.0
      %772 = vst [vmem:[#allocation3 + $0x48] sm:$0x1] 0.0
      %773 = vst [vmem:[#allocation3 + $0x50] sm:$0xff] 0.0
      %774 = vst [vmem:[#allocation3 + $0x58] sm:$0x1] 0.0
      %775 = vst [vmem:[#allocation3 + $0x60] sm:$0xff] 0.0
      %776 = vst [vmem:[#allocation3 + $0x68] sm:$0x1] 0.0
      %777 = vst [vmem:[#allocation3 + $0x70] sm:$0xff] 0.0
      %778 = vst [vmem:[#allocation3 + $0x78] sm:$0x1] 0.0
      %779 = vst [vmem:[#allocation3 + $0x80] sm:$0xff] 0.0
      %780 = vst [vmem:[#allocation3 + $0x88] sm:$0x1] 0.0
      %s781 = scalar_lea.vmem [#allocation3], 16
      %782 = vst [vmem:[%s781 + $0x1] sm:$0x7f] %v756
      %s783 = scalar_lea.vmem [#allocation3], 32
      %784 = vst [vmem:[%s783 - $0x6] sm:$0x80] %v756
      %785 = vst [vmem:[%s783 + $0x2] sm:$0x3f] %v757
      %s786 = scalar_lea.vmem [#allocation3], 48
      %787 = vst [vmem:[%s786 - $0x5] sm:$0xc0] %v757
      %788 = vst [vmem:[%s786 + $0x3] sm:$0x1f] %v758
      %s789 = scalar_lea.vmem [#allocation3], 64
      %790 = vst [vmem:[%s789 - $0x4] sm:$0xe0] %v758
      %791 = vst [vmem:[%s789 + $0x4] sm:$0xf] %v759
      %s792 = scalar_lea.vmem [#allocation3], 80
      %793 = vst [vmem:[%s792 - $0x3] sm:$0xf0] %v759
      %794 = vst [vmem:[%s792 + $0x5] sm:$0x7] %v760
      %s795 = scalar_lea.vmem [#allocation3], 96
      %796 = vst [vmem:[%s795 - $0x2] sm:$0xf8] %v760
      %797 = vst [vmem:[%s795 + $0x6] sm:$0x3] %v761
      %s798 = scalar_lea.vmem [#allocation3], 112
      %799 = vst [vmem:[%s798 - $0x1] sm:$0xfc] %v761
      %800 = vst [vmem:[%s798 + $0x7] sm:$0x1] %v762
      %v801 = vld [vmem:[%s5] sm:$0x1]
      %v802 = vld [vmem:[%s5 + $0x1] sm:$0x1]
      %v803 = vld [vmem:[%s5 + $0x2] sm:$0x1]
      %v804 = vld [vmem:[%s5 + $0x3] sm:$0x1]
      %v805 = vld [vmem:[%s5 + $0x4] sm:$0x1]
      %v806 = vld [vmem:[%s5 + $0x5] sm:$0x1]
      %v807 = vld [vmem:[%s5 + $0x6] sm:$0x1]
      %v808 = vld [vmem:[%s5 + $0x7] sm:$0x1]
      %v809 = vld [vmem:[%s5 + $0x8] sm:$0x1]
      %v810 = vld [vmem:[#allocation3] sm:$0x7f]
      %v811 = vld [vmem:[#allocation3 + $0x10] sm:$0x7f]
      %v812 = vld [vmem:[#allocation3 + $0x20] sm:$0x7f]
      %v813 = vld [vmem:[#allocation3 + $0x30] sm:$0x7f]
      %v814 = vld [vmem:[#allocation3 + $0x40] sm:$0x7f]
      %v815 = vld [vmem:[#allocation3 + $0x50] sm:$0x7f]
      %v816 = vld [vmem:[#allocation3 + $0x60] sm:$0x7f]
      %v818 = vlaneseq
      %v819 = vshrl.u32 %v818, 7
      %v820 = vsub.s32 0, %v819
      %v821 = vrot.slane %v801, %v820
      %v823 = vmul.f32 %v810, %v821
      %v824 = vmul.f32 %v811, %v821
      %v825 = vmul.f32 %v812, %v821
      %v826 = vmul.f32 %v813, %v821
      %v827 = vmul.f32 %v814, %v821
      %v828 = vmul.f32 %v815, %v821
      %v829 = vmul.f32 %v816, %v821
      %v830 = vld [vmem:[#allocation3 + $0x1] sm:$0x7f]
      %v831 = vld [vmem:[#allocation3 + $0x11] sm:$0x7f]
      %v832 = vld [vmem:[#allocation3 + $0x21] sm:$0x7f]
      %v833 = vld [vmem:[#allocation3 + $0x31] sm:$0x7f]
      %v834 = vld [vmem:[#allocation3 + $0x41] sm:$0x7f]
      %v835 = vld [vmem:[#allocation3 + $0x51] sm:$0x7f]
      %v836 = vld [vmem:[#allocation3 + $0x61] sm:$0x7f]
      %v838 = vlaneseq
      %v839 = vshrl.u32 %v838, 7
      %v840 = vsub.s32 0, %v839
      %v841 = vrot.slane %v802, %v840
      %v843 = vmul.f32 %v830, %v841
      %v844 = vmul.f32 %v831, %v841
      %v845 = vmul.f32 %v832, %v841
      %v846 = vmul.f32 %v833, %v841
      %v847 = vmul.f32 %v834, %v841
      %v848 = vmul.f32 %v835, %v841
      %v849 = vmul.f32 %v836, %v841
      %v850 = vadd.f32 %v823, %v843
      %v851 = vadd.f32 %v824, %v844
      %v852 = vadd.f32 %v825, %v845
      %v853 = vadd.f32 %v826, %v846
      %v854 = vadd.f32 %v827, %v847
      %v855 = vadd.f32 %v828, %v848
      %v856 = vadd.f32 %v829, %v849
      %v857 = vld [vmem:[#allocation3 + $0x2] sm:$0x7f]
      %v858 = vld [vmem:[#allocation3 + $0x12] sm:$0x7f]
      %v859 = vld [vmem:[#allocation3 + $0x22] sm:$0x7f]
      %v860 = vld [vmem:[#allocation3 + $0x32] sm:$0x7f]
      %v861 = vld [vmem:[#allocation3 + $0x42] sm:$0x7f]
      %v862 = vld [vmem:[#allocation3 + $0x52] sm:$0x7f]
      %v863 = vld [vmem:[#allocation3 + $0x62] sm:$0x7f]
      %v865 = vlaneseq
      %v866 = vshrl.u32 %v865, 7
      %v867 = vsub.s32 0, %v866
      %v868 = vrot.slane %v803, %v867
      %v870 = vmul.f32 %v857, %v868
      %v871 = vmul.f32 %v858, %v868
      %v872 = vmul.f32 %v859, %v868
      %v873 = vmul.f32 %v860, %v868
      %v874 = vmul.f32 %v861, %v868
      %v875 = vmul.f32 %v862, %v868
      %v876 = vmul.f32 %v863, %v868
      %v877 = vadd.f32 %v850, %v870
      %v878 = vadd.f32 %v851, %v871
      %v879 = vadd.f32 %v852, %v872
      %v880 = vadd.f32 %v853, %v873
      %v881 = vadd.f32 %v854, %v874
      %v882 = vadd.f32 %v855, %v875
      %v883 = vadd.f32 %v856, %v876
      %v884 = vld [vmem:[%s781] sm:$0x7f]
      %v885 = vld [vmem:[%s781 + $0x10] sm:$0x7f]
      %v886 = vld [vmem:[%s781 + $0x20] sm:$0x7f]
      %v887 = vld [vmem:[%s781 + $0x30] sm:$0x7f]
      %v888 = vld [vmem:[%s781 + $0x40] sm:$0x7f]
      %v889 = vld [vmem:[%s781 + $0x50] sm:$0x7f]
      %v890 = vld [vmem:[%s781 + $0x60] sm:$0x7f]
      %v892 = vlaneseq
      %v893 = vshrl.u32 %v892, 7
      %v894 = vsub.s32 0, %v893
      %v895 = vrot.slane %v804, %v894
      %v897 = vmul.f32 %v884, %v895
      %v898 = vmul.f32 %v885, %v895
      %v899 = vmul.f32 %v886, %v895
      %v900 = vmul.f32 %v887, %v895
      %v901 = vmul.f32 %v888, %v895
      %v902 = vmul.f32 %v889, %v895
      %v903 = vmul.f32 %v890, %v895
      %v904 = vadd.f32 %v877, %v897
      %v905 = vadd.f32 %v878, %v898
      %v906 = vadd.f32 %v879, %v899
      %v907 = vadd.f32 %v880, %v900
      %v908 = vadd.f32 %v881, %v901
      %v909 = vadd.f32 %v882, %v902
      %v910 = vadd.f32 %v883, %v903
      %v911 = vld [vmem:[%s781 + $0x1] sm:$0x7f]
      %v912 = vld [vmem:[%s781 + $0x11] sm:$0x7f]
      %v913 = vld [vmem:[%s781 + $0x21] sm:$0x7f]
      %v914 = vld [vmem:[%s781 + $0x31] sm:$0x7f]
      %v915 = vld [vmem:[%s781 + $0x41] sm:$0x7f]
      %v916 = vld [vmem:[%s781 + $0x51] sm:$0x7f]
      %v917 = vld [vmem:[%s781 + $0x61] sm:$0x7f]
      %v919 = vlaneseq
      %v920 = vshrl.u32 %v919, 7
      %v921 = vsub.s32 0, %v920
      %v922 = vrot.slane %v805, %v921
      %v924 = vmul.f32 %v911, %v922
      %v925 = vmul.f32 %v912, %v922
      %v926 = vmul.f32 %v913, %v922
      %v927 = vmul.f32 %v914, %v922
      %v928 = vmul.f32 %v915, %v922
      %v929 = vmul.f32 %v916, %v922
      %v930 = vmul.f32 %v917, %v922
      %v931 = vadd.f32 %v904, %v924
      %v932 = vadd.f32 %v905, %v925
      %v933 = vadd.f32 %v906, %v926
      %v934 = vadd.f32 %v907, %v927
      %v935 = vadd.f32 %v908, %v928
      %v936 = vadd.f32 %v909, %v929
      %v937 = vadd.f32 %v910, %v930
      %v938 = vld [vmem:[%s781 + $0x2] sm:$0x7f]
      %v939 = vld [vmem:[%s781 + $0x12] sm:$0x7f]
      %v940 = vld [vmem:[%s781 + $0x22] sm:$0x7f]
      %v941 = vld [vmem:[%s781 + $0x32] sm:$0x7f]
      %v942 = vld [vmem:[%s781 + $0x42] sm:$0x7f]
      %v943 = vld [vmem:[%s781 + $0x52] sm:$0x7f]
      %v944 = vld [vmem:[%s781 + $0x62] sm:$0x7f]
      %v946 = vlaneseq
      %v947 = vshrl.u32 %v946, 7
      %v948 = vsub.s32 0, %v947
      %v949 = vrot.slane %v806, %v948
      %v951 = vmul.f32 %v938, %v949
      %v952 = vmul.f32 %v939, %v949
      %v953 = vmul.f32 %v940, %v949
      %v954 = vmul.f32 %v941, %v949
      %v955 = vmul.f32 %v942, %v949
      %v956 = vmul.f32 %v943, %v949
      %v957 = vmul.f32 %v944, %v949
      %v958 = vadd.f32 %v931, %v951
      %v959 = vadd.f32 %v932, %v952
      %v960 = vadd.f32 %v933, %v953
      %v961 = vadd.f32 %v934, %v954
      %v962 = vadd.f32 %v935, %v955
      %v963 = vadd.f32 %v936, %v956
      %v964 = vadd.f32 %v937, %v957
      %v965 = vld [vmem:[%s783] sm:$0x7f]
      %v966 = vld [vmem:[%s783 + $0x10] sm:$0x7f]
      %v967 = vld [vmem:[%s783 + $0x20] sm:$0x7f]
      %v968 = vld [vmem:[%s783 + $0x30] sm:$0x7f]
      %v969 = vld [vmem:[%s783 + $0x40] sm:$0x7f]
      %v970 = vld [vmem:[%s783 + $0x50] sm:$0x7f]
      %v971 = vld [vmem:[%s783 + $0x60] sm:$0x7f]
      %v973 = vlaneseq
      %v974 = vshrl.u32 %v973, 7
      %v975 = vsub.s32 0, %v974
      %v976 = vrot.slane %v807, %v975
      %v978 = vmul.f32 %v965, %v976
      %v979 = vmul.f32 %v966, %v976
      %v980 = vmul.f32 %v967, %v976
      %v981 = vmul.f32 %v968, %v976
      %v982 = vmul.f32 %v969, %v976
      %v983 = vmul.f32 %v970, %v976
      %v984 = vmul.f32 %v971, %v976
      %v985 = vadd.f32 %v958, %v978
      %v986 = vadd.f32 %v959, %v979
      %v987 = vadd.f32 %v960, %v980
      %v988 = vadd.f32 %v961, %v981
      %v989 = vadd.f32 %v962, %v982
      %v990 = vadd.f32 %v963, %v983
      %v991 = vadd.f32 %v964, %v984
      %v992 = vld [vmem:[%s783 + $0x1] sm:$0x7f]
      %v993 = vld [vmem:[%s783 + $0x11] sm:$0x7f]
      %v994 = vld [vmem:[%s783 + $0x21] sm:$0x7f]
      %v995 = vld [vmem:[%s783 + $0x31] sm:$0x7f]
      %v996 = vld [vmem:[%s783 + $0x41] sm:$0x7f]
      %v997 = vld [vmem:[%s783 + $0x51] sm:$0x7f]
      %v998 = vld [vmem:[%s783 + $0x61] sm:$0x7f]
      %v1000 = vlaneseq
      %v1001 = vshrl.u32 %v1000, 7
      %v1002 = vsub.s32 0, %v1001
      %v1003 = vrot.slane %v808, %v1002
      %v1005 = vmul.f32 %v992, %v1003
      %v1006 = vmul.f32 %v993, %v1003
      %v1007 = vmul.f32 %v994, %v1003
      %v1008 = vmul.f32 %v995, %v1003
      %v1009 = vmul.f32 %v996, %v1003
      %v1010 = vmul.f32 %v997, %v1003
      %v1011 = vmul.f32 %v998, %v1003
      %v1012 = vadd.f32 %v985, %v1005
      %v1013 = vadd.f32 %v986, %v1006
      %v1014 = vadd.f32 %v987, %v1007
      %v1015 = vadd.f32 %v988, %v1008
      %v1016 = vadd.f32 %v989, %v1009
      %v1017 = vadd.f32 %v990, %v1010
      %v1018 = vadd.f32 %v991, %v1011
      %v1019 = vld [vmem:[%s783 + $0x2] sm:$0x7f]
      %v1020 = vld [vmem:[%s783 + $0x12] sm:$0x7f]
      %v1021 = vld [vmem:[%s783 + $0x22] sm:$0x7f]
      %v1022 = vld [vmem:[%s783 + $0x32] sm:$0x7f]
      %v1023 = vld [vmem:[%s783 + $0x42] sm:$0x7f]
      %v1024 = vld [vmem:[%s783 + $0x52] sm:$0x7f]
      %v1025 = vld [vmem:[%s783 + $0x62] sm:$0x7f]
      %v1027 = vlaneseq
      %v1028 = vshrl.u32 %v1027, 7
      %v1029 = vsub.s32 0, %v1028
      %v1030 = vrot.slane %v809, %v1029
      %v1032 = vmul.f32 %v1019, %v1030
      %v1033 = vmul.f32 %v1020, %v1030
      %v1034 = vmul.f32 %v1021, %v1030
      %v1035 = vmul.f32 %v1022, %v1030
      %v1036 = vmul.f32 %v1023, %v1030
      %v1037 = vmul.f32 %v1024, %v1030
      %v1038 = vmul.f32 %v1025, %v1030
      %v1039 = vadd.f32 %v1012, %v1032
      %v1040 = vadd.f32 %v1013, %v1033
      %v1041 = vadd.f32 %v1014, %v1034
      %v1042 = vadd.f32 %v1015, %v1035
      %v1043 = vadd.f32 %v1016, %v1036
      %v1044 = vadd.f32 %v1017, %v1037
      %v1045 = vadd.f32 %v1018, %v1038
      %1046 = vst [vmem:[#allocation2] sm:$0x7f] %v1039
      %1047 = vst [vmem:[#allocation2 + $0x7] sm:$0x7f] %v1040
      %1048 = vst [vmem:[#allocation2 + $0xe] sm:$0x7f] %v1041
      %1049 = vst [vmem:[#allocation2 + $0x15] sm:$0x7f] %v1042
      %1050 = vst [vmem:[#allocation2 + $0x1c] sm:$0x7f] %v1043
      %1051 = vst [vmem:[#allocation2 + $0x23] sm:$0x7f] %v1044
      %1052 = vst [vmem:[#allocation2 + $0x2a] sm:$0x7f] %v1045
      %v1053 = vld [vmem:[#allocation2] sm:$0xff]
      %v1054 = vld [vmem:[#allocation2 + $0x8] sm:$0xff]
      %v1055 = vld [vmem:[#allocation2 + $0x10] sm:$0xff]
      %v1056 = vld [vmem:[#allocation2 + $0x18] sm:$0xff]
      %v1057 = vld [vmem:[#allocation2 + $0x20] sm:$0xff]
      %v1058 = vld [vmem:[#allocation2 + $0x28] sm:$0xff]
      %v1059 = vld [vmem:[#allocation2 + $0x30] sm:$0x1]
      %v1060 = vpack.c.bf16 %v1054, %v1053
      %v1061 = vpack.c.bf16 %v1056, %v1055
      %v1062 = vpack.c.bf16 %v1058, %v1057
      %v1063 = vpack.c.bf16 %v1059, %v1059
      %v1064 = vld [vmem:[%s6] sm:$0xff]
      %v1065 = vld [vmem:[%s6 + $0x8] sm:$0xff]
      %v1066 = vld [vmem:[%s6 + $0x10] sm:$0xff]
      %v1067 = vld [vmem:[%s6 + $0x18] sm:$0xff]
      %v1068 = vld [vmem:[%s6 + $0x20] sm:$0xff]
      %v1069 = vld [vmem:[%s6 + $0x28] sm:$0xff]
      %v1070 = vld [vmem:[%s6 + $0x30] sm:$0xff]
      %v1071 = vld [vmem:[%s6 + $0x38] sm:$0xff]
      %v1072 = vld [vmem:[%s6 + $0x40] sm:$0xff]
      %v1073 = vld [vmem:[%s6 + $0x48] sm:$0xff]
      %v1074 = vld [vmem:[%s6 + $0x50] sm:$0xff]
      %v1075 = vld [vmem:[%s6 + $0x58] sm:$0xff]
      %v1076 = vld [vmem:[%s6 + $0x60] sm:$0xff]
      %v1077 = vld [vmem:[%s6 + $0x68] sm:$0xff]
      %v1078 = vld [vmem:[%s6 + $0x70] sm:$0xff]
      %v1079 = vld [vmem:[%s6 + $0x78] sm:$0xff]
      %v1096 = vunpack.c.l.b16 %v1064
      %v1097 = vunpack.c.h.b16 %v1064
      %v1098 = vunpack.c.l.b16 %v1065
      %v1099 = vunpack.c.h.b16 %v1065
      %v1100 = vunpack.c.l.b16 %v1066
      %v1101 = vunpack.c.h.b16 %v1066
      %v1102 = vunpack.c.l.b16 %v1067
      %v1103 = vunpack.c.h.b16 %v1067
      %v1104 = vunpack.c.l.b16 %v1068
      %v1105 = vunpack.c.h.b16 %v1068
      %v1106 = vunpack.c.l.b16 %v1069
      %v1107 = vunpack.c.h.b16 %v1069
      %v1108 = vunpack.c.l.b16 %v1070
      %v1109 = vunpack.c.h.b16 %v1070
      %v1110 = vunpack.c.l.b16 %v1071
      %v1111 = vunpack.c.h.b16 %v1071
      %v1112 = vunpack.c.l.b16 %v1072
      %v1113 = vunpack.c.h.b16 %v1072
      %v1114 = vunpack.c.l.b16 %v1073
      %v1115 = vunpack.c.h.b16 %v1073
      %v1116 = vunpack.c.l.b16 %v1074
      %v1117 = vunpack.c.h.b16 %v1074
      %v1118 = vunpack.c.l.b16 %v1075
      %v1119 = vunpack.c.h.b16 %v1075
      %v1120 = vunpack.c.l.b16 %v1076
      %v1121 = vunpack.c.h.b16 %v1076
      %v1122 = vunpack.c.l.b16 %v1077
      %v1123 = vunpack.c.h.b16 %v1077
      %v1124 = vunpack.c.l.b16 %v1078
      %v1125 = vunpack.c.h.b16 %v1078
      %v1126 = vunpack.c.l.b16 %v1079
      %v1127 = vunpack.c.h.b16 %v1079
      %v1128 = vpack.c.b16 %v1098, %v1096
      %v1129 = vpack.c.b16 %v1099, %v1097
      %v1130 = vpack.c.b16 %v1102, %v1100
      %v1131 = vpack.c.b16 %v1103, %v1101
      %v1132 = vpack.c.b16 %v1106, %v1104
      %v1133 = vpack.c.b16 %v1107, %v1105
      %v1134 = vpack.c.b16 %v1110, %v1108
      %v1135 = vpack.c.b16 %v1111, %v1109
      %v1136 = vpack.c.b16 %v1114, %v1112
      %v1137 = vpack.c.b16 %v1115, %v1113
      %v1138 = vpack.c.b16 %v1118, %v1116
      %v1139 = vpack.c.b16 %v1119, %v1117
      %v1140 = vpack.c.b16 %v1122, %v1120
      %v1141 = vpack.c.b16 %v1123, %v1121
      %v1142 = vpack.c.b16 %v1126, %v1124
      %v1143 = vpack.c.b16 %v1127, %v1125
      %1160 = vmatprep.subr.bf16.mxu0 %v1129
      %1161 = vmatpush1.bf16.msra.mxu0 %v1128
      %1162 = vmatprep.subr.bf16.mxu0 %v1131
      %1163 = vmatpush1.bf16.msra.mxu0 %v1130
      %1164 = vmatprep.subr.bf16.mxu0 %v1133
      %1165 = vmatpush1.bf16.msra.mxu0 %v1132
      %1166 = vmatprep.subr.bf16.mxu0 %v1135
      %1167 = vmatpush1.bf16.msra.mxu0 %v1134
      %1168 = vmatprep.subr.bf16.mxu0 %v1137
      %1169 = vmatpush1.bf16.msra.mxu0 %v1136
      %1170 = vmatprep.subr.bf16.mxu0 %v1139
      %1171 = vmatpush1.bf16.msra.mxu0 %v1138
      %1172 = vmatprep.subr.bf16.mxu0 %v1141
      %1173 = vmatpush1.bf16.msra.mxu0 %v1140
      %1174 = vmatprep.subr.bf16.mxu0 %v1143
      %1175 = vmatpush1.bf16.msra.mxu0 %v1142
      %1176 = vmatprep.subr.bf16.mxu0 0
      %1177 = vmatpush1.bf16.msra.mxu0 0
      %1178 = vmatprep.subr.bf16.mxu0 0
      %1179 = vmatpush1.bf16.msra.mxu0 0
      %1180 = vmatprep.subr.bf16.mxu0 0
      %1181 = vmatpush1.bf16.msra.mxu0 0
      %1182 = vmatprep.subr.bf16.mxu0 0
      %1183 = vmatpush1.bf16.msra.mxu0 0
      %1184 = vmatprep.subr.bf16.mxu0 0
      %1185 = vmatpush1.bf16.msra.mxu0 0
      %1186 = vmatprep.subr.bf16.mxu0 0
      %1187 = vmatpush1.bf16.msra.mxu0 0
      %1188 = vmatprep.subr.bf16.mxu0 0
      %1189 = vmatpush1.bf16.msra.mxu0 0
      %1190 = vmatprep.subr.bf16.mxu0 0
      %1191 = vmatpush1.bf16.msra.mxu0 0
      %1192 = vmatprep.mubr.bf16.mxu0 0
      %1193 = vmatmul.mubr.bf16.gmra.mrb[0].mxu0 %v1060
      %v1194 = vpop.f32.mrb[0].mxu0
      %v1195 = vadd.f32 0.0, %v1194
      %v1196 = vpop.f32.mrb[0].mxu0
      %v1197 = vadd.f32 0.0, %v1196
      %v1198 = vpop.f32.mrb[0].mxu0
      %v1199 = vadd.f32 0.0, %v1198
      %v1200 = vpop.f32.mrb[0].mxu0
      %v1201 = vadd.f32 0.0, %v1200
      %1202 = vmatprep.mubr.bf16.mxu0 0
      %1203 = vmatmul.mubr.bf16.gmra.mrb[0].mxu0 %v1061
      %v1204 = vpop.f32.mrb[0].mxu0
      %v1205 = vadd.f32 0.0, %v1204
      %v1206 = vpop.f32.mrb[0].mxu0
      %v1207 = vadd.f32 0.0, %v1206
      %v1208 = vpop.f32.mrb[0].mxu0
      %v1209 = vadd.f32 0.0, %v1208
      %v1210 = vpop.f32.mrb[0].mxu0
      %v1211 = vadd.f32 0.0, %v1210
      %1212 = vmatprep.mubr.bf16.mxu0 0
      %1213 = vmatmul.mubr.bf16.gmra.mrb[0].mxu0 %v1062
      %v1214 = vpop.f32.mrb[0].mxu0
      %v1215 = vadd.f32 0.0, %v1214
      %v1216 = vpop.f32.mrb[0].mxu0
      %v1217 = vadd.f32 0.0, %v1216
      %v1218 = vpop.f32.mrb[0].mxu0
      %v1219 = vadd.f32 0.0, %v1218
      %v1220 = vpop.f32.mrb[0].mxu0
      %v1221 = vadd.f32 0.0, %v1220
      %1222 = vmatprep.mubr.bf16.mxu0 0
      %1223 = vmatmul.mubr.bf16.gmra.mrb[0].mxu0 %v1063
      %v1224 = vpop.f32.mrb[0].mxu0
      %v1225 = vadd.f32 0.0, %v1224
      %v1226 = vpop.f32.mrb[0].mxu0
      %v1227 = vadd.f32 0.0, %v1226
      %v1228 = vpop.f32.mrb[0].mxu0
      %v1229 = vpop.f32.mrb[0].mxu0
      %1230 = vdwg.mxu0
      %v1231 = vld [vmem:[%s7] sm:$0x3]
      %v1233 = vlaneseq
      %v1234 = vshrl.u32 %v1233, 7
      %v1235 = vsub.s32 0, %v1234
      %v1236 = vrot.slane %v1231, %v1235
      %v1237 = vlaneseq
      %v1238 = vshrl.u32 %v1237, 7
      %v1239 = vsub.s32 1, %v1238
      %v1240 = vrot.slane %v1231, %v1239
      %v1243 = vmul.f32 %v1195, %v1236
      %v1244 = vmul.f32 %v1197, %v1240
      %v1245 = vmul.f32 %v1199, %v1236
      %v1246 = vmul.f32 %v1201, %v1240
      %v1247 = vmul.f32 %v1205, %v1236
      %v1248 = vmul.f32 %v1207, %v1240
      %v1249 = vmul.f32 %v1209, %v1236
      %v1250 = vmul.f32 %v1211, %v1240
      %v1251 = vmul.f32 %v1215, %v1236
      %v1252 = vmul.f32 %v1217, %v1240
      %v1253 = vmul.f32 %v1219, %v1236
      %v1254 = vmul.f32 %v1221, %v1240
      %v1255 = vmul.f32 %v1225, %v1236
      %v1256 = vmul.f32 %v1227, %v1240
      %v1257 = vld [vmem:[%s8] sm:$0x3]
      %v1259 = vlaneseq
      %v1260 = vshrl.u32 %v1259, 7
      %v1261 = vsub.s32 0, %v1260
      %v1262 = vrot.slane %v1257, %v1261
      %v1263 = vlaneseq
      %v1264 = vshrl.u32 %v1263, 7
      %v1265 = vsub.s32 1, %v1264
      %v1266 = vrot.slane %v1257, %v1265
      %v1269 = vadd.f32 %v1243, %v1262
      %v1270 = vadd.f32 %v1244, %v1266
      %v1271 = vadd.f32 %v1245, %v1262
      %v1272 = vadd.f32 %v1246, %v1266
      %v1273 = vadd.f32 %v1247, %v1262
      %v1274 = vadd.f32 %v1248, %v1266
      %v1275 = vadd.f32 %v1249, %v1262
      %v1276 = vadd.f32 %v1250, %v1266
      %v1277 = vadd.f32 %v1251, %v1262
      %v1278 = vadd.f32 %v1252, %v1266
      %v1279 = vadd.f32 %v1253, %v1262
      %v1280 = vadd.f32 %v1254, %v1266
      %v1281 = vadd.f32 %v1255, %v1262
      %v1282 = vadd.f32 %v1256, %v1266
      %v1283 = vmax.f32 %v1269, 0.0
      %v1284 = vmax.f32 %v1270, 0.0
      %v1285 = vmax.f32 %v1271, 0.0
      %v1286 = vmax.f32 %v1272, 0.0
      %v1287 = vmax.f32 %v1273, 0.0
      %v1288 = vmax.f32 %v1274, 0.0
      %v1289 = vmax.f32 %v1275, 0.0
      %v1290 = vmax.f32 %v1276, 0.0
      %v1291 = vmax.f32 %v1277, 0.0
      %v1292 = vmax.f32 %v1278, 0.0
      %v1293 = vmax.f32 %v1279, 0.0
      %v1294 = vmax.f32 %v1280, 0.0
      %v1295 = vmax.f32 %v1281, 0.0
      %v1296 = vmax.f32 %v1282, 0.0
      %v1297 = vadd.f32 %v1283, %v1285
      %v1298 = vadd.f32 %v1297, %v1287
      %v1299 = vadd.f32 %v1298, %v1289
      %v1300 = vadd.f32 %v1299, %v1291
      %v1301 = vadd.f32 %v1300, %v1293
      %vm1302 = vcmask 1040384
      %v1303 = vsel %vm1302, %v1295, 0.0
      %v1304 = vadd.f32 %v1301, %v1303
      %v1305 = vrot.slane %v1304, 4
      %v1306 = vadd.f32 %v1304, %v1305
      %v1307 = vrot.slane %v1306, 2
      %v1308 = vadd.f32 %v1306, %v1307
      %v1309 = vrot.slane %v1308, 1
      %v1310 = vadd.f32 %v1308, %v1309
      %v1311 = vadd.f32 %v1284, %v1286
      %v1312 = vadd.f32 %v1311, %v1288
      %v1313 = vadd.f32 %v1312, %v1290
      %v1314 = vadd.f32 %v1313, %v1292
      %v1315 = vadd.f32 %v1314, %v1294
      %v1316 = vsel %vm1302, %v1296, 0.0
      %v1317 = vadd.f32 %v1315, %v1316
      %v1318 = vrot.slane %v1317, 4
      %v1319 = vadd.f32 %v1317, %v1318
      %v1320 = vrot.slane %v1319, 2
      %v1321 = vadd.f32 %v1319, %v1320
      %v1322 = vrot.slane %v1321, 1
      %v1323 = vadd.f32 %v1321, %v1322
      %v1324 = vrcp.pop 49.0
      %v1325 = vmul.f32 %v1310, %v1324
      %v1326 = vmul.f32 %v1323, %v1324
      %v1329 = vcombine.low %v1325, %v1326
      %v1331 = vunpack.c.l.s4 1966171168
      %v1332 = vunpack.c.0.s8 %v1331
      %v1333 = vlaneseq
      %v1334 = vshrl.u32 %v1333, 7
      %v1335 = vsub.s32 %v1332, %v1334
      %v1336 = vrot.slane %v1329, %v1335
      %v1338 = vunpack.c.l.s4 1966171168
      %v1339 = vunpack.c.0.s8 %v1338
      %v1340 = vlaneseq
      %v1341 = vshrl.u32 %v1340, 7
      %v1342 = vsub.s32 %v1339, %v1341
      %v1343 = vrot.slane %v1336, %v1342
      %v1345 = vlaneseq
      %vm1346 = vcmp.ge.s32.totalorder %v1345, 0
      %vm1347 = vcmp.lt.s32.totalorder %v1345, 256
      %vm1348 = vmand %vm1346, %vm1347
      %1349 = vst.msk [vmem:[%s330] sm:$0x3] %vm1348, %v1343
      %p1350 = scmp.lt.s32.totalorder %s20, 7
      %s1351 = scalar_select %p1350, %s20, 7
      %s1352 = smul.addr %s1351, 2
      %s1353 = scalar_lea.vmem %s9, %s1352
      // Predicated region
      $region57: #{tsn_middle3_forward.2} parent=55 // pred_check
        %p1354 = pneg %p232
      $region58: #{tsn_middle3_forward.2} parent=55 // pred_check_branch
        %1356 = sbr.rel (%p1354) target = $region60
      $region59: #{tsn_middle3_forward.2} parent=55 // pred_region
        _
      $region60: #{tsn_middle3_forward.2} parent=55 // pred_fallthru
        _
    $region56: #{tsn_middle3_forward.2} parent=5 // pred_fallthru
      _
    %p1357 = scmp.le.s32.totalorder 2, %s15
    // Predicated region
    $region61: #{tsn_middle3_forward.2} parent=5 // pred_check
      %p1358 = pneg %p1357
    $region62: #{tsn_middle3_forward.2} parent=5 // pred_check_branch
      %1360 = sbr.rel (%p1358) target = $region64
    $region63: #{tsn_middle3_forward.2} parent=5 // pred_region
      %s1361 = ssub.s32 %s15, 2
      // Predicated region
      $region65: #{tsn_middle3_forward.2} parent=63 // pred_check
        %p1362 = pneg %p238
      $region66: #{tsn_middle3_forward.2} parent=63 // pred_check_branch
        %1364 = sbr.rel (%p1362) target = $region68
      $region67: #{tsn_middle3_forward.2} parent=63 // pred_region
        %p1365 = scmp.lt.s32.totalorder %s21, 7
        %s1366 = scalar_select %p1365, %s21, 7
        %s1367 = smul.addr %s1366, 2
        %s1368 = scalar_lea.vmem %s9, %s1367
      $region68: #{tsn_middle3_forward.2} parent=63 // pred_fallthru
        _
    $region64: #{tsn_middle3_forward.2} parent=5 // pred_fallthru
      _
  $region6: #{tsn_middle3_forward.2} parent=0 // loop_footer
    %s19 = sadd.s32 1, %s15
  $region7: #{tsn_middle3_forward.2} parent=0 // loop_footer_branch
    %14 = sbr.rel target = $region3
  $region8: #{tsn_middle3_forward.2} parent=0 // loop_exit
    _

</llo_original>
